<compile_context>
chip_gen: v6e
topology: v6e:2x2x1
jax: 0.10.0
libtpu: 0.0.40
codegen_flags: <defaults>
</compile_context>

<pallas_src>
import math

import numpy as np

import jax
import jax.numpy as jnp
from jax import lax
from jax.experimental import pallas as pl
from jax.experimental.pallas import tpu as pltpu

LRELU_SLOPE = 0.2
KW = 5            # (de)conv kernel width
Z_DIM = 16
L_IN = 1024       # forced by fc1.in_features = 16 * z_dim and two MaxPool1d(4)
NL = 64           # per-sample pooled length == lanes per sample
LANES = 2 * NL    # 2 samples lane-packed per slab row
TB_MAX = 8        # max sample-pairs per grid step


# --------------------------------------------------------------------------- #
# Constant structural tensors (pure numpy, built once at import time).
# --------------------------------------------------------------------------- #
def _build_placements():
    # conv1: rows [8q+o] (q = out phase mod 16, o = out channel),
    #        cols [d+16] with d = q+k-2 over the [x(-1), x, x(+1)] stack.
    p1 = np.zeros((128, 48, 8, KW), np.float32)
    for q in range(16):
        for o in range(8):
            for k in range(KW):
                p1[8 * q + o, q + k + 14, o, k] = 1.0
    # conv2: rows [8p+o] (p = out phase mod 4, o < 4 real, o >= 4 zero pad),
    #        cols [8*(p+k) + ci] over the 8-slab shifted h1 stack.
    p2 = np.zeros((32, 64, 4, 8, KW), np.float32)
    for p in range(4):
        for o in range(4):
            for ci in range(8):
                for k in range(KW):
                    p2[8 * p + o, 8 * (p + k) + ci, o, ci, k] = 1.0
    # deconv2: rows [8p+o], cols [4g+ci], g in {0: shift(-1), 1: v1, 2: shift(+1)}.
    pd2 = np.zeros((32, 12, 8, 4, KW), np.float32)
    for p in range(4):
        for o in range(8):
            for ci in range(4):
                for k in range(KW):
                    g = (p + k - 2) // 4 + 1
                    pd2[8 * p + o, 4 * g + ci, o, ci, k] = 1.0
    # deconv3: rows [q] (out phase mod 16), cols [8*(a+1)+c],
    #          a = (q+k-2)//4 over [shift(v2[3],-1), v2[0..3], shift(v2[0],+1)].
    pd3 = np.zeros((16, 48, 8, KW), np.float32)
    for q in range(16):
        for c in range(8):
            for k in range(KW):
                a = (q + k - 2) // 4
                pd3[q, 8 * (a + 1) + c, c, k] = 1.0
    return p1, p2, pd2, pd3


_P1, _P2, _PD2, _PD3 = _build_placements()


def _lane_constants():
    lane = np.arange(LANES)
    seg = lane % NL
    consts = np.zeros((8, LANES), np.float32)
    consts[0] = (seg >= 2).astype(np.float32)        # valid lanes for shift d = -2
    consts[1] = (seg >= 1).astype(np.float32)        # shift d = -1
    consts[2] = (seg + 1 < NL).astype(np.float32)    # shift d = +1
    consts[3] = (seg + 2 < NL).astype(np.float32)    # shift d = +2
    consts[4] = (lane < NL).astype(np.float32)       # sample-A lanes
    consts[5] = (lane >= NL).astype(np.float32)      # sample-B lanes
    e8 = np.zeros((16, LANES), np.float32)           # up-x8 one-hot selector
    for j in range(16):
        e8[j] = ((seg // 8) == (j % 8)).astype(np.float32)
    return consts, e8


_LCONSTS, _E8 = _lane_constants()


# --------------------------------------------------------------------------- #
# Fused kernel: TB sample-pairs per grid step, each pair lane-packed to 128.
# --------------------------------------------------------------------------- #
def _cae_kernel(x_ref, w1_ref, w2_ref, wfc_ref, wd1_ref, wd2_ref, wd3_ref,
                e8_ref, lc_ref, o_ref):
    f32 = jnp.float32
    tb = x_ref.shape[0]

    def lrelu(v):
        return jnp.maximum(v, LRELU_SLOPE * v)

    def body(t, carry):
        consts = lc_ref[...]                                  # (8, 128)

        def shift(x, d):
            # out[:, l] = x[:, l+d] inside each 64-lane sample segment,
            # zero outside (signal boundary / sample seam).
            if d == 0:
                return x
            n = x.shape[-1]
            pad = jnp.zeros(x.shape[:-1] + (abs(d),), x.dtype)
            if d > 0:
                y = jnp.concatenate([x[..., d:], pad], axis=-1)
            else:
                y = jnp.concatenate([pad, x[..., :n + d]], axis=-1)
            row = {-2: 0, -1: 1, 1: 2, 2: 3}[d]
            return y * consts[row:row + 1, :]

        x16 = x_ref[t].astype(f32)                            # (16, 128) phase-16 input

        # ---- conv1 -> leaky_relu -> maxpool(4), interleaved per pooled phase
        stack_x = jnp.concatenate([shift(x16, -1), x16, shift(x16, 1)], axis=0)  # (48,128)
        h1 = []
        for p in range(4):
            sub = jnp.dot(w1_ref[32 * p:32 * p + 32, :], stack_x,
                          preferred_element_type=f32)          # (32, 128)
            m = jnp.maximum(jnp.maximum(sub[0:8], sub[8:16]),
                            jnp.maximum(sub[16:24], sub[24:32]))
            h1.append(lrelu(m))                                # (8, 128)

        # ---- conv2 -> leaky_relu -> maxpool(4)
        stack_2 = jnp.concatenate(
            [shift(h1[2], -1), shift(h1[3], -1), h1[0], h1[1], h1[2], h1[3],
             shift(h1[0], 1), shift(h1[1], 1)], axis=0)        # (64, 128)
        o2 = jnp.dot(w2_ref[...], stack_2, preferred_element_type=f32)   # (32, 128)
        h2 = lrelu(jnp.maximum(jnp.maximum(o2[0:8], o2[8:16]),
                               jnp.maximum(o2[16:24], o2[24:32])))       # (8, 128)

        # ---- fc1 (torch channel-major flatten), both lane-packed samples at once
        acc = wfc_ref[0:16, :] * h2[0:1, :]
        acc = acc + wfc_ref[16:32, :] * h2[1:2, :]
        acc = acc + wfc_ref[32:48, :] * h2[2:3, :]
        acc = acc + wfc_ref[48:64, :] * h2[3:4, :]             # (16, 128)
        m_a = consts[4:5, :]
        m_b = consts[5:6, :]
        z_a = jnp.sum(acc * m_a, axis=1, keepdims=True)        # (16, 1) z of sample A
        z_b = jnp.sum(acc * m_b, axis=1, keepdims=True)        # (16, 1) z of sample B

        # ---- decoder head: view(2,8) -> leaky_relu -> nearest x8 -> (2, 128)
        zb = lrelu(z_a) * m_a + lrelu(z_b) * m_b               # (16, 128)
        sel = zb * e8_ref[...]
        u1 = jnp.concatenate(
            [jnp.sum(sel[0:8], axis=0, keepdims=True),
             jnp.sum(sel[8:16], axis=0, keepdims=True)], axis=0)   # (2, 128)

        # ---- deconv1 -> leaky_relu
        stack_d1 = jnp.concatenate(
            [shift(u1, -2), shift(u1, -1), u1, shift(u1, 1), shift(u1, 2)],
            axis=0)                                            # (10, 128)
        v1 = lrelu(jnp.dot(wd1_ref[...], stack_d1,
                           preferred_element_type=f32))        # (4, 128)

        # ---- nearest x4 -> deconv2 -> leaky_relu   (phase-4 output)
        stack_d2 = jnp.concatenate([shift(v1, -1), v1, shift(v1, 1)], axis=0)  # (12,128)
        o5 = jnp.dot(wd2_ref[...], stack_d2, preferred_element_type=f32)       # (32,128)
        v2 = [lrelu(o5[8 * p:8 * p + 8]) for p in range(4)]

        # ---- nearest x4 -> deconv3 -> sigmoid      (phase-16 output)
        stack_d3 = jnp.concatenate(
            [shift(v2[3], -1), v2[0], v2[1], v2[2], v2[3], shift(v2[0], 1)],
            axis=0)                                            # (48, 128)
        y3 = jnp.dot(wd3_ref[...], stack_d3, preferred_element_type=f32)  # (16, 128)
        o_ref[t] = jax.nn.sigmoid(y3).astype(o_ref.dtype)
        return carry

    lax.fori_loop(0, tb, body, 0)


# --------------------------------------------------------------------------- #
# Wrapper: weight prep (structural matrices), lane packing, pallas_call.
# --------------------------------------------------------------------------- #
def _prepare_weights(params):
    hp = jax.lax.Precision.HIGHEST
    w1 = params["conv1"][:, 0, :].astype(jnp.float32)                       # (8, 5)
    w2 = params["conv2"].astype(jnp.float32)                                # (4, 8, 5)
    wfc = params["fc1"].astype(jnp.float32)                                 # (16, 256)
    # ConvTranspose1d(stride=1, pad=2) == Conv1d with flipped taps & swapped in/out
    wd1 = jnp.transpose(params["deconv1"][:, :, ::-1], (1, 0, 2)).astype(jnp.float32)  # (4,2,5)
    wd2 = jnp.transpose(params["deconv2"][:, :, ::-1], (1, 0, 2)).astype(jnp.float32)  # (8,4,5)
    wd3 = params["deconv3"][:, 0, ::-1].astype(jnp.float32)                            # (8,5)

    w1big = jnp.tensordot(jnp.asarray(_P1), w1, axes=[[2, 3], [0, 1]],
                          precision=hp)                                     # (128, 48)
    w2big = jnp.tensordot(jnp.asarray(_P2), w2, axes=[[2, 3, 4], [0, 1, 2]],
                          precision=hp)                                     # (32, 64)
    wd1big = jnp.transpose(wd1, (0, 2, 1)).reshape(4, 2 * KW)               # (4, 10)
    wd2big = jnp.tensordot(jnp.asarray(_PD2), wd2, axes=[[2, 3, 4], [0, 1, 2]],
                           precision=hp)                                    # (32, 12)
    wd3big = jnp.tensordot(jnp.asarray(_PD3), wd3, axes=[[2, 3], [0, 1]],
                           precision=hp)                                    # (16, 48)
    # fc1 packed: rows [16c + j], lanes duplicated across the two 64-lane samples
    wfcp = jnp.tile(
        jnp.transpose(wfc.reshape(16, 4, NL), (1, 0, 2)).reshape(64, NL),
        (1, 2))                                                             # (64, 128)
    return w1big, w2big, wfcp, wd1big, wd2big, wd3big


def autoencoder_forward(x_ncl, params):
    """x_ncl: (B, 1, 1024) -> (B, 1, 1024). Single fused Pallas kernel."""
    b = x_ncl.shape[0]
    assert x_ncl.shape[1:] == (1, L_IN)

    w1big, w2big, wfcp, wd1big, wd2big, wd3big = _prepare_weights(params)
    e8 = jnp.asarray(_E8)
    lconsts = jnp.asarray(_LCONSTS)

    # ---- batch packing: 2 samples per 128-lane slab, TB pairs per grid step --
    b_even = ((b + 1) // 2) * 2
    n_pairs = b_even // 2
    tb = min(TB_MAX, max(1, (n_pairs + 1) // 2))   # keep grid >= 2 when possible (v7x)
    n_pairs_pad = ((n_pairs + tb - 1) // tb) * tb
    b_pad = 2 * n_pairs_pad
    grid = (n_pairs_pad // tb,)

    xf = x_ncl.astype(jnp.float32).reshape(b, L_IN)
    if b_pad > b:
        xf = jnp.concatenate([xf, jnp.zeros((b_pad - b, L_IN), jnp.float32)], axis=0)
    # phase-16 per sample, then lane-pack sample pairs -> (pairs, 16, 128)
    x16 = xf.reshape(b_pad, NL, 16).transpose(0, 2, 1)
    x16 = x16.reshape(n_pairs_pad, 2, 16, NL).transpose(0, 2, 1, 3)
    x16 = x16.reshape(n_pairs_pad, 16, LANES)

    out_ph = pl.pallas_call(
        _cae_kernel,
        out_shape=jax.ShapeDtypeStruct((n_pairs_pad, 16, LANES), jnp.float32),
        grid=grid,
        in_specs=[
            pl.BlockSpec((tb, 16, LANES), lambda i: (i, 0, 0)),
            pl.BlockSpec((128, 48), lambda i: (0, 0)),
            pl.BlockSpec((32, 64), lambda i: (0, 0)),
            pl.BlockSpec((64, LANES), lambda i: (0, 0)),
            pl.BlockSpec((4, 2 * KW), lambda i: (0, 0)),
            pl.BlockSpec((32, 12), lambda i: (0, 0)),
            pl.BlockSpec((16, 48), lambda i: (0, 0)),
            pl.BlockSpec((16, LANES), lambda i: (0, 0)),
            pl.BlockSpec((8, LANES), lambda i: (0, 0)),
        ],
        out_specs=pl.BlockSpec((tb, 16, LANES), lambda i: (i, 0, 0)),
        compiler_params=pltpu.CompilerParams(dimension_semantics=("parallel",)),
    )(x16, w1big, w2big, wfcp, wd1big, wd2big, wd3big, e8, lconsts)

    # ---- unpack lanes/phases back to (B, 1, 1024) ----------------------------
    out = out_ph.reshape(n_pairs_pad, 16, 2, NL).transpose(0, 2, 1, 3)
    out = out.reshape(b_pad, 16, NL).transpose(0, 2, 1).reshape(b_pad, 1, L_IN)
    return out[:b]


# --------------------------------------------------------------------------- #
# Pure-JAX (XLA) reference of the same forward pass.
# --------------------------------------------------------------------------- #
def _reference_forward(x_ncl, params):
    hp = jax.lax.Precision.HIGHEST

    def lrelu(v):
        return jnp.where(v > 0, v, LRELU_SLOPE * v)

    def conv1d(x, w):                     # x: (B, Cin, L), w: (Cout, Cin, K), pad=2
        return jax.lax.conv_general_dilated(
            x, w, window_strides=(1,), padding=[(2, 2)],
            dimension_numbers=("NCH", "OIH", "NCH"), precision=hp)

    def maxpool4(x):
        bb, c, l = x.shape
        return jnp.max(x.reshape(bb, c, l // 4, 4), axis=-1)

    def conv_t(x, w):                     # ConvTranspose1d(stride=1, pad=2)
        wc = jnp.transpose(w[:, :, ::-1], (1, 0, 2))
        return conv1d(x, wc)

    bb = x_ncl.shape[0]
    h = maxpool4(lrelu(conv1d(x_ncl.astype(jnp.float32), params["conv1"])))
    h = maxpool4(lrelu(conv1d(h, params["conv2"])))
    z = jnp.dot(h.reshape(bb, -1), params["fc1"].T, precision=hp)
    d = z.reshape(bb, 2, 8)
    d = conv_t(jnp.repeat(lrelu(d), 8, axis=-1), params["deconv1"])
    d = conv_t(jnp.repeat(lrelu(d), 4, axis=-1), params["deconv2"])
    d = conv_t(jnp.repeat(lrelu(d), 4, axis=-1), params["deconv3"])
    return jax.nn.sigmoid(d)


def init_params(key, z_dim=Z_DIM):
    """Deterministic synthetic weights with the exact PyTorch shapes (bias=False)."""
    ks = jax.random.split(key, 6)

    def w(k, shape, fan_in):
        bound = 1.0 / math.sqrt(fan_in)
        return jax.random.uniform(k, shape, jnp.float32, -bound, bound)

    return dict(
        conv1=w(ks[0], (8, 1, KW), 1 * KW),            # Conv1d weight (Cout, Cin, K)
        conv2=w(ks[1], (4, 8, KW), 8 * KW),
        fc1=w(ks[2], (z_dim, 16 * z_dim), 16 * z_dim),  # Linear (out, in)
        deconv1=w(ks[3], (2, 4, KW), 2 * KW),          # ConvT weight (Cin, Cout, K)
        deconv2=w(ks[4], (4, 8, KW), 4 * KW),
        deconv3=w(ks[5], (8, 1, KW), 8 * KW),
    )


if __name__ == "__main__":
    key = jax.random.PRNGKey(0)
    kx, kp = jax.random.split(key)
    params = init_params(kp)

    fwd = jax.jit(autoencoder_forward)

    # batch 2: one lane-packed pair
    x = jax.random.normal(kx, (2, 1, L_IN), jnp.float32)
    out = jax.block_until_ready(fwd(x, params))
    assert out.shape == (2, 1, L_IN)
    assert bool(jnp.all(jnp.isfinite(out)))
    assert bool(jnp.all((out >= 0.0) & (out <= 1.0)))          # sigmoid range
    ref = jax.block_until_ready(_reference_forward(x, params))
    err = float(jnp.max(jnp.abs(out - ref)))
    # tolerance allows for multi-pass bf16 f32 matmuls on the MXU; a plumbing
    # bug (wrong tap / phase / seam) produces errors orders of magnitude larger.
    assert err < 5e-3, f"mismatch vs reference (B=2): {err}"

    # odd larger batch: exercises pair padding, the lane-seam masks between two
    # different samples, the in-kernel TB loop and a grid with > 1 step.
    x2 = jax.random.normal(jax.random.PRNGKey(1), (13, 1, L_IN), jnp.float32)
    out2 = jax.block_until_ready(fwd(x2, params))
    ref2 = jax.block_until_ready(_reference_forward(x2, params))
    err2 = float(jnp.max(jnp.abs(out2 - ref2)))
    assert err2 < 5e-3, f"mismatch vs reference (B=13): {err2}"

    print("KERNEL_OK")
</pallas_src>

<mosaic_0001>
module attributes {stable_mosaic.version = 11 : i64} {
  func.func @_cae_kernel(%arg0: i32, %arg1: memref<1x16x128xf32, #tpu.memory_space<vmem>>, %arg2: memref<128x48xf32, #tpu.memory_space<vmem>>, %arg3: memref<32x64xf32, #tpu.memory_space<vmem>>, %arg4: memref<64x128xf32, #tpu.memory_space<vmem>>, %arg5: memref<4x10xf32, #tpu.memory_space<vmem>>, %arg6: memref<32x12xf32, #tpu.memory_space<vmem>>, %arg7: memref<16x48xf32, #tpu.memory_space<vmem>>, %arg8: memref<16x128xf32, #tpu.memory_space<vmem>>, %arg9: memref<8x128xf32, #tpu.memory_space<vmem>>, %arg10: memref<1x16x128xf32, #tpu.memory_space<vmem>>) attributes {dimension_semantics = [#tpu.dimension_semantics<parallel>], iteration_bounds = array<i64: 1>, scalar_prefetch = 0 : i64, scratch_operands = 0 : i64, tpu.core_type = #tpu.core_type<tc>, window_params = [{transform_indices = @transform_0, window_bounds = array<i64: 1, 16, 128>}, {pipeline_mode = #tpu.pipeline_mode<synchronous>, transform_indices = @transform_1, window_bounds = array<i64: 128, 48>}, {pipeline_mode = #tpu.pipeline_mode<synchronous>, transform_indices = @transform_2, window_bounds = array<i64: 32, 64>}, {pipeline_mode = #tpu.pipeline_mode<synchronous>, transform_indices = @transform_3, window_bounds = array<i64: 64, 128>}, {pipeline_mode = #tpu.pipeline_mode<synchronous>, transform_indices = @transform_4, window_bounds = array<i64: 4, 10>}, {pipeline_mode = #tpu.pipeline_mode<synchronous>, transform_indices = @transform_5, window_bounds = array<i64: 32, 12>}, {pipeline_mode = #tpu.pipeline_mode<synchronous>, transform_indices = @transform_6, window_bounds = array<i64: 16, 48>}, {pipeline_mode = #tpu.pipeline_mode<synchronous>, transform_indices = @transform_7, window_bounds = array<i64: 16, 128>}, {pipeline_mode = #tpu.pipeline_mode<synchronous>, transform_indices = @transform_8, window_bounds = array<i64: 8, 128>}, {transform_indices = @transform_9, window_bounds = array<i64: 1, 16, 128>}]} {
    %c0_i32 = arith.constant 0 : i32
    %c0 = arith.constant 0 : index
    %c0_0 = arith.constant 0 : index
    %0 = vector.load %arg9[%c0, %c0_0] : memref<8x128xf32, #tpu.memory_space<vmem>>, vector<8x128xf32>
    %1 = arith.index_cast %c0_i32 : i32 to index
    %c0_1 = arith.constant 0 : index
    %c0_2 = arith.constant 0 : index
    %2 = vector.load %arg1[%1, %c0_1, %c0_2] : memref<1x16x128xf32, #tpu.memory_space<vmem>>, vector<1x16x128xf32>
    %3 = vector.shape_cast %2 : vector<1x16x128xf32> to vector<16x128xf32>
    %cst = arith.constant 0.000000e+00 : f32
    %4 = vector.broadcast %cst : f32 to vector<16x1xf32>
    %5 = vector.extract_strided_slice %3 {offsets = [0, 0], sizes = [16, 127], strides = [1, 1]} : vector<16x128xf32> to vector<16x127xf32>
    %6 = tpu.concatenate %4, %5 in 1 : vector<16x1xf32>, vector<16x127xf32> -> vector<16x128xf32>
    %7 = vector.extract_strided_slice %0 {offsets = [1, 0], sizes = [1, 128], strides = [1, 1]} : vector<8x128xf32> to vector<1x128xf32>
    %8 = vector.broadcast %7 : vector<1x128xf32> to vector<16x128xf32>
    %9 = arith.mulf %6, %8 : vector<16x128xf32>
    %cst_3 = arith.constant 0.000000e+00 : f32
    %10 = vector.broadcast %cst_3 : f32 to vector<16x1xf32>
    %11 = vector.extract_strided_slice %3 {offsets = [0, 1], sizes = [16, 127], strides = [1, 1]} : vector<16x128xf32> to vector<16x127xf32>
    %12 = tpu.concatenate %11, %10 in 1 : vector<16x127xf32>, vector<16x1xf32> -> vector<16x128xf32>
    %13 = vector.extract_strided_slice %0 {offsets = [2, 0], sizes = [1, 128], strides = [1, 1]} : vector<8x128xf32> to vector<1x128xf32>
    %14 = vector.broadcast %13 : vector<1x128xf32> to vector<16x128xf32>
    %15 = arith.mulf %12, %14 : vector<16x128xf32>
    %16 = tpu.concatenate %9, %3, %15 in 0 : vector<16x128xf32>, vector<16x128xf32>, vector<16x128xf32> -> vector<48x128xf32>
    %c0_4 = arith.constant 0 : index
    %c0_5 = arith.constant 0 : index
    %17 = vector.load %arg2[%c0_4, %c0_5] : memref<128x48xf32, #tpu.memory_space<vmem>>, vector<32x48xf32>
    %cst_6 = arith.constant dense<0.000000e+00> : vector<32x128xf32>
    %18 = tpu.matmul %17, %16, %cst_6 {dimension_numbers = #tpu.dot_dimension_numbers<[1], [0], [0], [1], [0, 0, 1, 1], [], []>} : vector<32x48xf32>, vector<48x128xf32>, vector<32x128xf32> -> vector<32x128xf32>
    %19 = vector.extract_strided_slice %18 {offsets = [0, 0], sizes = [8, 128], strides = [1, 1]} : vector<32x128xf32> to vector<8x128xf32>
    %20 = vector.extract_strided_slice %18 {offsets = [8, 0], sizes = [8, 128], strides = [1, 1]} : vector<32x128xf32> to vector<8x128xf32>
    %21 = arith.maximumf %19, %20 : vector<8x128xf32>
    %22 = vector.extract_strided_slice %18 {offsets = [16, 0], sizes = [8, 128], strides = [1, 1]} : vector<32x128xf32> to vector<8x128xf32>
    %23 = vector.extract_strided_slice %18 {offsets = [24, 0], sizes = [8, 128], strides = [1, 1]} : vector<32x128xf32> to vector<8x128xf32>
    %24 = arith.maximumf %22, %23 : vector<8x128xf32>
    %25 = arith.maximumf %21, %24 : vector<8x128xf32>
    %cst_7 = arith.constant 2.000000e-01 : f32
    %26 = vector.broadcast %cst_7 : f32 to vector<8x128xf32>
    %27 = arith.mulf %26, %25 : vector<8x128xf32>
    %28 = arith.maximumf %25, %27 : vector<8x128xf32>
    %c32 = arith.constant 32 : index
    %c0_8 = arith.constant 0 : index
    %29 = vector.load %arg2[%c32, %c0_8] : memref<128x48xf32, #tpu.memory_space<vmem>>, vector<32x48xf32>
    %cst_9 = arith.constant dense<0.000000e+00> : vector<32x128xf32>
    %30 = tpu.matmul %29, %16, %cst_9 {dimension_numbers = #tpu.dot_dimension_numbers<[1], [0], [0], [1], [0, 0, 1, 1], [], []>} : vector<32x48xf32>, vector<48x128xf32>, vector<32x128xf32> -> vector<32x128xf32>
    %31 = vector.extract_strided_slice %30 {offsets = [0, 0], sizes = [8, 128], strides = [1, 1]} : vector<32x128xf32> to vector<8x128xf32>
    %32 = vector.extract_strided_slice %30 {offsets = [8, 0], sizes = [8, 128], strides = [1, 1]} : vector<32x128xf32> to vector<8x128xf32>
    %33 = arith.maximumf %31, %32 : vector<8x128xf32>
    %34 = vector.extract_strided_slice %30 {offsets = [16, 0], sizes = [8, 128], strides = [1, 1]} : vector<32x128xf32> to vector<8x128xf32>
    %35 = vector.extract_strided_slice %30 {offsets = [24, 0], sizes = [8, 128], strides = [1, 1]} : vector<32x128xf32> to vector<8x128xf32>
    %36 = arith.maximumf %34, %35 : vector<8x128xf32>
    %37 = arith.maximumf %33, %36 : vector<8x128xf32>
    %cst_10 = arith.constant 2.000000e-01 : f32
    %38 = vector.broadcast %cst_10 : f32 to vector<8x128xf32>
    %39 = arith.mulf %38, %37 : vector<8x128xf32>
    %40 = arith.maximumf %37, %39 : vector<8x128xf32>
    %c64 = arith.constant 64 : index
    %c0_11 = arith.constant 0 : index
    %41 = vector.load %arg2[%c64, %c0_11] : memref<128x48xf32, #tpu.memory_space<vmem>>, vector<32x48xf32>
    %cst_12 = arith.constant dense<0.000000e+00> : vector<32x128xf32>
    %42 = tpu.matmul %41, %16, %cst_12 {dimension_numbers = #tpu.dot_dimension_numbers<[1], [0], [0], [1], [0, 0, 1, 1], [], []>} : vector<32x48xf32>, vector<48x128xf32>, vector<32x128xf32> -> vector<32x128xf32>
    %43 = vector.extract_strided_slice %42 {offsets = [0, 0], sizes = [8, 128], strides = [1, 1]} : vector<32x128xf32> to vector<8x128xf32>
    %44 = vector.extract_strided_slice %42 {offsets = [8, 0], sizes = [8, 128], strides = [1, 1]} : vector<32x128xf32> to vector<8x128xf32>
    %45 = arith.maximumf %43, %44 : vector<8x128xf32>
    %46 = vector.extract_strided_slice %42 {offsets = [16, 0], sizes = [8, 128], strides = [1, 1]} : vector<32x128xf32> to vector<8x128xf32>
    %47 = vector.extract_strided_slice %42 {offsets = [24, 0], sizes = [8, 128], strides = [1, 1]} : vector<32x128xf32> to vector<8x128xf32>
    %48 = arith.maximumf %46, %47 : vector<8x128xf32>
    %49 = arith.maximumf %45, %48 : vector<8x128xf32>
    %cst_13 = arith.constant 2.000000e-01 : f32
    %50 = vector.broadcast %cst_13 : f32 to vector<8x128xf32>
    %51 = arith.mulf %50, %49 : vector<8x128xf32>
    %52 = arith.maximumf %49, %51 : vector<8x128xf32>
    %c96 = arith.constant 96 : index
    %c0_14 = arith.constant 0 : index
    %53 = vector.load %arg2[%c96, %c0_14] : memref<128x48xf32, #tpu.memory_space<vmem>>, vector<32x48xf32>
    %cst_15 = arith.constant dense<0.000000e+00> : vector<32x128xf32>
    %54 = tpu.matmul %53, %16, %cst_15 {dimension_numbers = #tpu.dot_dimension_numbers<[1], [0], [0], [1], [0, 0, 1, 1], [], []>} : vector<32x48xf32>, vector<48x128xf32>, vector<32x128xf32> -> vector<32x128xf32>
    %55 = vector.extract_strided_slice %54 {offsets = [0, 0], sizes = [8, 128], strides = [1, 1]} : vector<32x128xf32> to vector<8x128xf32>
    %56 = vector.extract_strided_slice %54 {offsets = [8, 0], sizes = [8, 128], strides = [1, 1]} : vector<32x128xf32> to vector<8x128xf32>
    %57 = arith.maximumf %55, %56 : vector<8x128xf32>
    %58 = vector.extract_strided_slice %54 {offsets = [16, 0], sizes = [8, 128], strides = [1, 1]} : vector<32x128xf32> to vector<8x128xf32>
    %59 = vector.extract_strided_slice %54 {offsets = [24, 0], sizes = [8, 128], strides = [1, 1]} : vector<32x128xf32> to vector<8x128xf32>
    %60 = arith.maximumf %58, %59 : vector<8x128xf32>
    %61 = arith.maximumf %57, %60 : vector<8x128xf32>
    %cst_16 = arith.constant 2.000000e-01 : f32
    %62 = vector.broadcast %cst_16 : f32 to vector<8x128xf32>
    %63 = arith.mulf %62, %61 : vector<8x128xf32>
    %64 = arith.maximumf %61, %63 : vector<8x128xf32>
    %cst_17 = arith.constant 0.000000e+00 : f32
    %65 = vector.broadcast %cst_17 : f32 to vector<8x1xf32>
    %66 = vector.extract_strided_slice %52 {offsets = [0, 0], sizes = [8, 127], strides = [1, 1]} : vector<8x128xf32> to vector<8x127xf32>
    %67 = tpu.concatenate %65, %66 in 1 : vector<8x1xf32>, vector<8x127xf32> -> vector<8x128xf32>
    %68 = vector.extract_strided_slice %0 {offsets = [1, 0], sizes = [1, 128], strides = [1, 1]} : vector<8x128xf32> to vector<1x128xf32>
    %69 = vector.broadcast %68 : vector<1x128xf32> to vector<8x128xf32>
    %70 = arith.mulf %67, %69 : vector<8x128xf32>
    %cst_18 = arith.constant 0.000000e+00 : f32
    %71 = vector.broadcast %cst_18 : f32 to vector<8x1xf32>
    %72 = vector.extract_strided_slice %64 {offsets = [0, 0], sizes = [8, 127], strides = [1, 1]} : vector<8x128xf32> to vector<8x127xf32>
    %73 = tpu.concatenate %71, %72 in 1 : vector<8x1xf32>, vector<8x127xf32> -> vector<8x128xf32>
    %74 = vector.extract_strided_slice %0 {offsets = [1, 0], sizes = [1, 128], strides = [1, 1]} : vector<8x128xf32> to vector<1x128xf32>
    %75 = vector.broadcast %74 : vector<1x128xf32> to vector<8x128xf32>
    %76 = arith.mulf %73, %75 : vector<8x128xf32>
    %cst_19 = arith.constant 0.000000e+00 : f32
    %77 = vector.broadcast %cst_19 : f32 to vector<8x1xf32>
    %78 = vector.extract_strided_slice %28 {offsets = [0, 1], sizes = [8, 127], strides = [1, 1]} : vector<8x128xf32> to vector<8x127xf32>
    %79 = tpu.concatenate %78, %77 in 1 : vector<8x127xf32>, vector<8x1xf32> -> vector<8x128xf32>
    %80 = vector.extract_strided_slice %0 {offsets = [2, 0], sizes = [1, 128], strides = [1, 1]} : vector<8x128xf32> to vector<1x128xf32>
    %81 = vector.broadcast %80 : vector<1x128xf32> to vector<8x128xf32>
    %82 = arith.mulf %79, %81 : vector<8x128xf32>
    %cst_20 = arith.constant 0.000000e+00 : f32
    %83 = vector.broadcast %cst_20 : f32 to vector<8x1xf32>
    %84 = vector.extract_strided_slice %40 {offsets = [0, 1], sizes = [8, 127], strides = [1, 1]} : vector<8x128xf32> to vector<8x127xf32>
    %85 = tpu.concatenate %84, %83 in 1 : vector<8x127xf32>, vector<8x1xf32> -> vector<8x128xf32>
    %86 = vector.extract_strided_slice %0 {offsets = [2, 0], sizes = [1, 128], strides = [1, 1]} : vector<8x128xf32> to vector<1x128xf32>
    %87 = vector.broadcast %86 : vector<1x128xf32> to vector<8x128xf32>
    %88 = arith.mulf %85, %87 : vector<8x128xf32>
    %89 = tpu.concatenate %70, %76, %28, %40, %52, %64, %82, %88 in 0 : vector<8x128xf32>, vector<8x128xf32>, vector<8x128xf32>, vector<8x128xf32>, vector<8x128xf32>, vector<8x128xf32>, vector<8x128xf32>, vector<8x128xf32> -> vector<64x128xf32>
    %c0_21 = arith.constant 0 : index
    %c0_22 = arith.constant 0 : index
    %90 = vector.load %arg3[%c0_21, %c0_22] : memref<32x64xf32, #tpu.memory_space<vmem>>, vector<32x64xf32>
    %cst_23 = arith.constant dense<0.000000e+00> : vector<32x128xf32>
    %91 = tpu.matmul %90, %89, %cst_23 {dimension_numbers = #tpu.dot_dimension_numbers<[1], [0], [0], [1], [0, 0, 1, 1], [], []>} : vector<32x64xf32>, vector<64x128xf32>, vector<32x128xf32> -> vector<32x128xf32>
    %92 = vector.extract_strided_slice %91 {offsets = [0, 0], sizes = [8, 128], strides = [1, 1]} : vector<32x128xf32> to vector<8x128xf32>
    %93 = vector.extract_strided_slice %91 {offsets = [8, 0], sizes = [8, 128], strides = [1, 1]} : vector<32x128xf32> to vector<8x128xf32>
    %94 = arith.maximumf %92, %93 : vector<8x128xf32>
    %95 = vector.extract_strided_slice %91 {offsets = [16, 0], sizes = [8, 128], strides = [1, 1]} : vector<32x128xf32> to vector<8x128xf32>
    %96 = vector.extract_strided_slice %91 {offsets = [24, 0], sizes = [8, 128], strides = [1, 1]} : vector<32x128xf32> to vector<8x128xf32>
    %97 = arith.maximumf %95, %96 : vector<8x128xf32>
    %98 = arith.maximumf %94, %97 : vector<8x128xf32>
    %cst_24 = arith.constant 2.000000e-01 : f32
    %99 = vector.broadcast %cst_24 : f32 to vector<8x128xf32>
    %100 = arith.mulf %99, %98 : vector<8x128xf32>
    %101 = arith.maximumf %98, %100 : vector<8x128xf32>
    %c0_25 = arith.constant 0 : index
    %c0_26 = arith.constant 0 : index
    %102 = vector.load %arg4[%c0_25, %c0_26] : memref<64x128xf32, #tpu.memory_space<vmem>>, vector<16x128xf32>
    %103 = vector.extract_strided_slice %101 {offsets = [0, 0], sizes = [1, 128], strides = [1, 1]} : vector<8x128xf32> to vector<1x128xf32>
    %104 = vector.broadcast %103 : vector<1x128xf32> to vector<16x128xf32>
    %105 = arith.mulf %102, %104 : vector<16x128xf32>
    %c16 = arith.constant 16 : index
    %c0_27 = arith.constant 0 : index
    %106 = vector.load %arg4[%c16, %c0_27] : memref<64x128xf32, #tpu.memory_space<vmem>>, vector<16x128xf32>
    %107 = vector.extract_strided_slice %101 {offsets = [1, 0], sizes = [1, 128], strides = [1, 1]} : vector<8x128xf32> to vector<1x128xf32>
    %108 = vector.broadcast %107 : vector<1x128xf32> to vector<16x128xf32>
    %109 = arith.mulf %106, %108 : vector<16x128xf32>
    %110 = arith.addf %105, %109 : vector<16x128xf32>
    %c32_28 = arith.constant 32 : index
    %c0_29 = arith.constant 0 : index
    %111 = vector.load %arg4[%c32_28, %c0_29] : memref<64x128xf32, #tpu.memory_space<vmem>>, vector<16x128xf32>
    %112 = vector.extract_strided_slice %101 {offsets = [2, 0], sizes = [1, 128], strides = [1, 1]} : vector<8x128xf32> to vector<1x128xf32>
    %113 = vector.broadcast %112 : vector<1x128xf32> to vector<16x128xf32>
    %114 = arith.mulf %111, %113 : vector<16x128xf32>
    %115 = arith.addf %110, %114 : vector<16x128xf32>
    %c48 = arith.constant 48 : index
    %c0_30 = arith.constant 0 : index
    %116 = vector.load %arg4[%c48, %c0_30] : memref<64x128xf32, #tpu.memory_space<vmem>>, vector<16x128xf32>
    %117 = vector.extract_strided_slice %101 {offsets = [3, 0], sizes = [1, 128], strides = [1, 1]} : vector<8x128xf32> to vector<1x128xf32>
    %118 = vector.broadcast %117 : vector<1x128xf32> to vector<16x128xf32>
    %119 = arith.mulf %116, %118 : vector<16x128xf32>
    %120 = arith.addf %115, %119 : vector<16x128xf32>
    %121 = vector.extract_strided_slice %0 {offsets = [4, 0], sizes = [1, 128], strides = [1, 1]} : vector<8x128xf32> to vector<1x128xf32>
    %122 = vector.extract_strided_slice %0 {offsets = [5, 0], sizes = [1, 128], strides = [1, 1]} : vector<8x128xf32> to vector<1x128xf32>
    %123 = vector.broadcast %121 : vector<1x128xf32> to vector<16x128xf32>
    %124 = arith.mulf %120, %123 : vector<16x128xf32>
    %cst_31 = arith.constant dense<0.000000e+00> : vector<16xf32>
    %125 = vector.multi_reduction <add>, %124, %cst_31 [1] : vector<16x128xf32> to vector<16xf32>
    %126 = vector.shape_cast %125 : vector<16xf32> to vector<16x1xf32>
    %127 = vector.broadcast %122 : vector<1x128xf32> to vector<16x128xf32>
    %128 = arith.mulf %120, %127 : vector<16x128xf32>
    %cst_32 = arith.constant dense<0.000000e+00> : vector<16xf32>
    %129 = vector.multi_reduction <add>, %128, %cst_32 [1] : vector<16x128xf32> to vector<16xf32>
    %130 = vector.shape_cast %129 : vector<16xf32> to vector<16x1xf32>
    %cst_33 = arith.constant 2.000000e-01 : f32
    %131 = vector.broadcast %cst_33 : f32 to vector<16x1xf32>
    %132 = arith.mulf %131, %126 : vector<16x1xf32>
    %133 = arith.maximumf %126, %132 : vector<16x1xf32>
    %134 = vector.broadcast %133 : vector<16x1xf32> to vector<16x128xf32>
    %135 = vector.broadcast %121 : vector<1x128xf32> to vector<16x128xf32>
    %136 = arith.mulf %134, %135 : vector<16x128xf32>
    %cst_34 = arith.constant 2.000000e-01 : f32
    %137 = vector.broadcast %cst_34 : f32 to vector<16x1xf32>
    %138 = arith.mulf %137, %130 : vector<16x1xf32>
    %139 = arith.maximumf %130, %138 : vector<16x1xf32>
    %140 = vector.broadcast %139 : vector<16x1xf32> to vector<16x128xf32>
    %141 = vector.broadcast %122 : vector<1x128xf32> to vector<16x128xf32>
    %142 = arith.mulf %140, %141 : vector<16x128xf32>
    %143 = arith.addf %136, %142 : vector<16x128xf32>
    %c0_35 = arith.constant 0 : index
    %c0_36 = arith.constant 0 : index
    %144 = vector.load %arg8[%c0_35, %c0_36] : memref<16x128xf32, #tpu.memory_space<vmem>>, vector<16x128xf32>
    %145 = arith.mulf %143, %144 : vector<16x128xf32>
    %146 = vector.extract_strided_slice %145 {offsets = [0, 0], sizes = [8, 128], strides = [1, 1]} : vector<16x128xf32> to vector<8x128xf32>
    %cst_37 = arith.constant dense<0.000000e+00> : vector<128xf32>
    %147 = vector.multi_reduction <add>, %146, %cst_37 [0] : vector<8x128xf32> to vector<128xf32>
    %148 = vector.shape_cast %147 : vector<128xf32> to vector<1x128xf32>
    %149 = vector.extract_strided_slice %145 {offsets = [8, 0], sizes = [8, 128], strides = [1, 1]} : vector<16x128xf32> to vector<8x128xf32>
    %cst_38 = arith.constant dense<0.000000e+00> : vector<128xf32>
    %150 = vector.multi_reduction <add>, %149, %cst_38 [0] : vector<8x128xf32> to vector<128xf32>
    %151 = vector.shape_cast %150 : vector<128xf32> to vector<1x128xf32>
    %152 = tpu.concatenate %148, %151 in 0 : vector<1x128xf32>, vector<1x128xf32> -> vector<2x128xf32>
    %cst_39 = arith.constant 0.000000e+00 : f32
    %153 = vector.broadcast %cst_39 : f32 to vector<2x2xf32>
    %154 = vector.extract_strided_slice %152 {offsets = [0, 0], sizes = [2, 126], strides = [1, 1]} : vector<2x128xf32> to vector<2x126xf32>
    %155 = tpu.concatenate %153, %154 in 1 : vector<2x2xf32>, vector<2x126xf32> -> vector<2x128xf32>
    %156 = vector.extract_strided_slice %0 {offsets = [0, 0], sizes = [1, 128], strides = [1, 1]} : vector<8x128xf32> to vector<1x128xf32>
    %157 = vector.broadcast %156 : vector<1x128xf32> to vector<2x128xf32>
    %158 = arith.mulf %155, %157 : vector<2x128xf32>
    %cst_40 = arith.constant 0.000000e+00 : f32
    %159 = vector.broadcast %cst_40 : f32 to vector<2x1xf32>
    %160 = vector.extract_strided_slice %152 {offsets = [0, 0], sizes = [2, 127], strides = [1, 1]} : vector<2x128xf32> to vector<2x127xf32>
    %161 = tpu.concatenate %159, %160 in 1 : vector<2x1xf32>, vector<2x127xf32> -> vector<2x128xf32>
    %162 = vector.extract_strided_slice %0 {offsets = [1, 0], sizes = [1, 128], strides = [1, 1]} : vector<8x128xf32> to vector<1x128xf32>
    %163 = vector.broadcast %162 : vector<1x128xf32> to vector<2x128xf32>
    %164 = arith.mulf %161, %163 : vector<2x128xf32>
    %cst_41 = arith.constant 0.000000e+00 : f32
    %165 = vector.broadcast %cst_41 : f32 to vector<2x1xf32>
    %166 = vector.extract_strided_slice %152 {offsets = [0, 1], sizes = [2, 127], strides = [1, 1]} : vector<2x128xf32> to vector<2x127xf32>
    %167 = tpu.concatenate %166, %165 in 1 : vector<2x127xf32>, vector<2x1xf32> -> vector<2x128xf32>
    %168 = vector.extract_strided_slice %0 {offsets = [2, 0], sizes = [1, 128], strides = [1, 1]} : vector<8x128xf32> to vector<1x128xf32>
    %169 = vector.broadcast %168 : vector<1x128xf32> to vector<2x128xf32>
    %170 = arith.mulf %167, %169 : vector<2x128xf32>
    %cst_42 = arith.constant 0.000000e+00 : f32
    %171 = vector.broadcast %cst_42 : f32 to vector<2x2xf32>
    %172 = vector.extract_strided_slice %152 {offsets = [0, 2], sizes = [2, 126], strides = [1, 1]} : vector<2x128xf32> to vector<2x126xf32>
    %173 = tpu.concatenate %172, %171 in 1 : vector<2x126xf32>, vector<2x2xf32> -> vector<2x128xf32>
    %174 = vector.extract_strided_slice %0 {offsets = [3, 0], sizes = [1, 128], strides = [1, 1]} : vector<8x128xf32> to vector<1x128xf32>
    %175 = vector.broadcast %174 : vector<1x128xf32> to vector<2x128xf32>
    %176 = arith.mulf %173, %175 : vector<2x128xf32>
    %177 = tpu.concatenate %158, %164, %152, %170, %176 in 0 : vector<2x128xf32>, vector<2x128xf32>, vector<2x128xf32>, vector<2x128xf32>, vector<2x128xf32> -> vector<10x128xf32>
    %c0_43 = arith.constant 0 : index
    %c0_44 = arith.constant 0 : index
    %178 = vector.load %arg5[%c0_43, %c0_44] : memref<4x10xf32, #tpu.memory_space<vmem>>, vector<4x10xf32>
    %cst_45 = arith.constant dense<0.000000e+00> : vector<4x128xf32>
    %179 = tpu.matmul %178, %177, %cst_45 {dimension_numbers = #tpu.dot_dimension_numbers<[1], [0], [0], [1], [0, 0, 1, 1], [], []>} : vector<4x10xf32>, vector<10x128xf32>, vector<4x128xf32> -> vector<4x128xf32>
    %cst_46 = arith.constant 2.000000e-01 : f32
    %180 = vector.broadcast %cst_46 : f32 to vector<4x128xf32>
    %181 = arith.mulf %180, %179 : vector<4x128xf32>
    %182 = arith.maximumf %179, %181 : vector<4x128xf32>
    %cst_47 = arith.constant 0.000000e+00 : f32
    %183 = vector.broadcast %cst_47 : f32 to vector<4x1xf32>
    %184 = vector.extract_strided_slice %182 {offsets = [0, 0], sizes = [4, 127], strides = [1, 1]} : vector<4x128xf32> to vector<4x127xf32>
    %185 = tpu.concatenate %183, %184 in 1 : vector<4x1xf32>, vector<4x127xf32> -> vector<4x128xf32>
    %186 = vector.extract_strided_slice %0 {offsets = [1, 0], sizes = [1, 128], strides = [1, 1]} : vector<8x128xf32> to vector<1x128xf32>
    %187 = vector.broadcast %186 : vector<1x128xf32> to vector<4x128xf32>
    %188 = arith.mulf %185, %187 : vector<4x128xf32>
    %cst_48 = arith.constant 0.000000e+00 : f32
    %189 = vector.broadcast %cst_48 : f32 to vector<4x1xf32>
    %190 = vector.extract_strided_slice %182 {offsets = [0, 1], sizes = [4, 127], strides = [1, 1]} : vector<4x128xf32> to vector<4x127xf32>
    %191 = tpu.concatenate %190, %189 in 1 : vector<4x127xf32>, vector<4x1xf32> -> vector<4x128xf32>
    %192 = vector.extract_strided_slice %0 {offsets = [2, 0], sizes = [1, 128], strides = [1, 1]} : vector<8x128xf32> to vector<1x128xf32>
    %193 = vector.broadcast %192 : vector<1x128xf32> to vector<4x128xf32>
    %194 = arith.mulf %191, %193 : vector<4x128xf32>
    %195 = tpu.concatenate %188, %182, %194 in 0 : vector<4x128xf32>, vector<4x128xf32>, vector<4x128xf32> -> vector<12x128xf32>
    %c0_49 = arith.constant 0 : index
    %c0_50 = arith.constant 0 : index
    %196 = vector.load %arg6[%c0_49, %c0_50] : memref<32x12xf32, #tpu.memory_space<vmem>>, vector<32x12xf32>
    %cst_51 = arith.constant dense<0.000000e+00> : vector<32x128xf32>
    %197 = tpu.matmul %196, %195, %cst_51 {dimension_numbers = #tpu.dot_dimension_numbers<[1], [0], [0], [1], [0, 0, 1, 1], [], []>} : vector<32x12xf32>, vector<12x128xf32>, vector<32x128xf32> -> vector<32x128xf32>
    %198 = vector.extract_strided_slice %197 {offsets = [0, 0], sizes = [8, 128], strides = [1, 1]} : vector<32x128xf32> to vector<8x128xf32>
    %cst_52 = arith.constant 2.000000e-01 : f32
    %199 = vector.broadcast %cst_52 : f32 to vector<8x128xf32>
    %200 = arith.mulf %199, %198 : vector<8x128xf32>
    %201 = arith.maximumf %198, %200 : vector<8x128xf32>
    %202 = vector.extract_strided_slice %197 {offsets = [8, 0], sizes = [8, 128], strides = [1, 1]} : vector<32x128xf32> to vector<8x128xf32>
    %cst_53 = arith.constant 2.000000e-01 : f32
    %203 = vector.broadcast %cst_53 : f32 to vector<8x128xf32>
    %204 = arith.mulf %203, %202 : vector<8x128xf32>
    %205 = arith.maximumf %202, %204 : vector<8x128xf32>
    %206 = vector.extract_strided_slice %197 {offsets = [16, 0], sizes = [8, 128], strides = [1, 1]} : vector<32x128xf32> to vector<8x128xf32>
    %cst_54 = arith.constant 2.000000e-01 : f32
    %207 = vector.broadcast %cst_54 : f32 to vector<8x128xf32>
    %208 = arith.mulf %207, %206 : vector<8x128xf32>
    %209 = arith.maximumf %206, %208 : vector<8x128xf32>
    %210 = vector.extract_strided_slice %197 {offsets = [24, 0], sizes = [8, 128], strides = [1, 1]} : vector<32x128xf32> to vector<8x128xf32>
    %cst_55 = arith.constant 2.000000e-01 : f32
    %211 = vector.broadcast %cst_55 : f32 to vector<8x128xf32>
    %212 = arith.mulf %211, %210 : vector<8x128xf32>
    %213 = arith.maximumf %210, %212 : vector<8x128xf32>
    %cst_56 = arith.constant 0.000000e+00 : f32
    %214 = vector.broadcast %cst_56 : f32 to vector<8x1xf32>
    %215 = vector.extract_strided_slice %213 {offsets = [0, 0], sizes = [8, 127], strides = [1, 1]} : vector<8x128xf32> to vector<8x127xf32>
    %216 = tpu.concatenate %214, %215 in 1 : vector<8x1xf32>, vector<8x127xf32> -> vector<8x128xf32>
    %217 = vector.extract_strided_slice %0 {offsets = [1, 0], sizes = [1, 128], strides = [1, 1]} : vector<8x128xf32> to vector<1x128xf32>
    %218 = vector.broadcast %217 : vector<1x128xf32> to vector<8x128xf32>
    %219 = arith.mulf %216, %218 : vector<8x128xf32>
    %cst_57 = arith.constant 0.000000e+00 : f32
    %220 = vector.broadcast %cst_57 : f32 to vector<8x1xf32>
    %221 = vector.extract_strided_slice %201 {offsets = [0, 1], sizes = [8, 127], strides = [1, 1]} : vector<8x128xf32> to vector<8x127xf32>
    %222 = tpu.concatenate %221, %220 in 1 : vector<8x127xf32>, vector<8x1xf32> -> vector<8x128xf32>
    %223 = vector.extract_strided_slice %0 {offsets = [2, 0], sizes = [1, 128], strides = [1, 1]} : vector<8x128xf32> to vector<1x128xf32>
    %224 = vector.broadcast %223 : vector<1x128xf32> to vector<8x128xf32>
    %225 = arith.mulf %222, %224 : vector<8x128xf32>
    %226 = tpu.concatenate %219, %201, %205, %209, %213, %225 in 0 : vector<8x128xf32>, vector<8x128xf32>, vector<8x128xf32>, vector<8x128xf32>, vector<8x128xf32>, vector<8x128xf32> -> vector<48x128xf32>
    %c0_58 = arith.constant 0 : index
    %c0_59 = arith.constant 0 : index
    %227 = vector.load %arg7[%c0_58, %c0_59] : memref<16x48xf32, #tpu.memory_space<vmem>>, vector<16x48xf32>
    %cst_60 = arith.constant dense<0.000000e+00> : vector<16x128xf32>
    %228 = tpu.matmul %227, %226, %cst_60 {dimension_numbers = #tpu.dot_dimension_numbers<[1], [0], [0], [1], [0, 0, 1, 1], [], []>} : vector<16x48xf32>, vector<48x128xf32>, vector<16x128xf32> -> vector<16x128xf32>
    %229 = arith.negf %228 : vector<16x128xf32>
    %230 = math.exp %229 : vector<16x128xf32>
    %cst_61 = arith.constant 1.000000e+00 : f32
    %231 = vector.broadcast %cst_61 : f32 to vector<16x128xf32>
    %232 = arith.addf %231, %230 : vector<16x128xf32>
    %233 = arith.divf %231, %232 : vector<16x128xf32>
    %234 = arith.index_cast %c0_i32 : i32 to index
    %c0_62 = arith.constant 0 : index
    %c0_63 = arith.constant 0 : index
    %235 = vector.load %arg10[%234, %c0_62, %c0_63] : memref<1x16x128xf32, #tpu.memory_space<vmem>>, vector<1x16x128xf32>
    %236 = vector.shape_cast %235 : vector<1x16x128xf32> to vector<16x128xf32>
    %237 = vector.shape_cast %233 : vector<16x128xf32> to vector<1x16x128xf32>
    tpu.vector_store %arg10[%234, %c0_62, %c0_63], %237 {strides = array<i32>} : memref<1x16x128xf32, #tpu.memory_space<vmem>>, vector<1x16x128xf32>,
    %c1_i32 = arith.constant 1 : i32
    return
  }
  func.func @transform_0(%arg0: i32) -> (i32, i32, i32) {
    %c0_i32 = arith.constant 0 : i32
    %c0_i32_0 = arith.constant 0 : i32
    %c0_i32_1 = arith.constant 0 : i32
    return %arg0, %c0_i32, %c0_i32_0 : i32, i32, i32
  }
  func.func @transform_1(%arg0: i32) -> (i32, i32) {
    %c0_i32 = arith.constant 0 : i32
    %c0_i32_0 = arith.constant 0 : i32
    %c0_i32_1 = arith.constant 0 : i32
    return %c0_i32, %c0_i32_0 : i32, i32
  }
  func.func @transform_2(%arg0: i32) -> (i32, i32) {
    %c0_i32 = arith.constant 0 : i32
    %c0_i32_0 = arith.constant 0 : i32
    %c0_i32_1 = arith.constant 0 : i32
    return %c0_i32, %c0_i32_0 : i32, i32
  }
  func.func @transform_3(%arg0: i32) -> (i32, i32) {
    %c0_i32 = arith.constant 0 : i32
    %c0_i32_0 = arith.constant 0 : i32
    %c0_i32_1 = arith.constant 0 : i32
    return %c0_i32, %c0_i32_0 : i32, i32
  }
  func.func @transform_4(%arg0: i32) -> (i32, i32) {
    %c0_i32 = arith.constant 0 : i32
    %c0_i32_0 = arith.constant 0 : i32
    %c0_i32_1 = arith.constant 0 : i32
    return %c0_i32, %c0_i32_0 : i32, i32
  }
  func.func @transform_5(%arg0: i32) -> (i32, i32) {
    %c0_i32 = arith.constant 0 : i32
    %c0_i32_0 = arith.constant 0 : i32
    %c0_i32_1 = arith.constant 0 : i32
    return %c0_i32, %c0_i32_0 : i32, i32
  }
  func.func @transform_6(%arg0: i32) -> (i32, i32) {
    %c0_i32 = arith.constant 0 : i32
    %c0_i32_0 = arith.constant 0 : i32
    %c0_i32_1 = arith.constant 0 : i32
    return %c0_i32, %c0_i32_0 : i32, i32
  }
  func.func @transform_7(%arg0: i32) -> (i32, i32) {
    %c0_i32 = arith.constant 0 : i32
    %c0_i32_0 = arith.constant 0 : i32
    %c0_i32_1 = arith.constant 0 : i32
    return %c0_i32, %c0_i32_0 : i32, i32
  }
  func.func @transform_8(%arg0: i32) -> (i32, i32) {
    %c0_i32 = arith.constant 0 : i32
    %c0_i32_0 = arith.constant 0 : i32
    %c0_i32_1 = arith.constant 0 : i32
    return %c0_i32, %c0_i32_0 : i32, i32
  }
  func.func @transform_9(%arg0: i32) -> (i32, i32, i32) {
    %c0_i32 = arith.constant 0 : i32
    %c0_i32_0 = arith.constant 0 : i32
    %c0_i32_1 = arith.constant 0 : i32
    return %arg0, %c0_i32, %c0_i32_0 : i32, i32, i32
  }
}

</mosaic_0001>

<llo_original>
// kernel: tile.7
$region0: #{tile.7}
  %s0 = inlined_call_operand.vmem [shape: f32[64,2,64], index: 0, kind: input, shape index: {}]
  %s1 = inlined_call_operand.vmem [shape: f32[64,128], index: 1, kind: output, shape index: {}]
  $region1: #{tile.7} parent=0
    #allocation0 [shape = 'u8[262144]{0}', space=vmem, size = 0x40000, scoped, tag = 'scoped mem for input reshape']
    %s3 = sshll.u32 1, 2
    %s4 = ssub.s32 %s3, 1
    %s5 = smul.addr 2, 63
    %s6 = scalar_lea.vmem %s0, %s5
    %v7 = vld [vmem:[%s6] sm:%s4]
    %s8 = scalar_lea.vmem [#allocation0], 504
    %9 = vst [vmem:[%s8] sm:%s4] %v7
    %s10 = smul.addr 2, 62
    %s11 = scalar_lea.vmem %s0, %s10
    %v12 = vld [vmem:[%s11] sm:%s4]
    %s13 = scalar_lea.vmem [#allocation0], 496
    %14 = vst [vmem:[%s13] sm:%s4] %v12
    %s15 = smul.addr 2, 61
    %s16 = scalar_lea.vmem %s0, %s15
    %v17 = vld [vmem:[%s16] sm:%s4]
    %s18 = scalar_lea.vmem [#allocation0], 488
    %19 = vst [vmem:[%s18] sm:%s4] %v17
    %s20 = smul.addr 2, 60
    %s21 = scalar_lea.vmem %s0, %s20
    %v22 = vld [vmem:[%s21] sm:%s4]
    %s23 = scalar_lea.vmem [#allocation0], 480
    %24 = vst [vmem:[%s23] sm:%s4] %v22
    %s25 = smul.addr 2, 59
    %s26 = scalar_lea.vmem %s0, %s25
    %v27 = vld [vmem:[%s26] sm:%s4]
    %s28 = scalar_lea.vmem [#allocation0], 472
    %29 = vst [vmem:[%s28] sm:%s4] %v27
    %s30 = smul.addr 2, 58
    %s31 = scalar_lea.vmem %s0, %s30
    %v32 = vld [vmem:[%s31] sm:%s4]
    %s33 = scalar_lea.vmem [#allocation0], 464
    %34 = vst [vmem:[%s33] sm:%s4] %v32
    %s35 = smul.addr 2, 57
    %s36 = scalar_lea.vmem %s0, %s35
    %v37 = vld [vmem:[%s36] sm:%s4]
    %s38 = scalar_lea.vmem [#allocation0], 456
    %39 = vst [vmem:[%s38] sm:%s4] %v37
    %s40 = smul.addr 2, 56
    %s41 = scalar_lea.vmem %s0, %s40
    %v42 = vld [vmem:[%s41] sm:%s4]
    %s43 = scalar_lea.vmem [#allocation0], 448
    %44 = vst [vmem:[%s43] sm:%s4] %v42
    %s45 = smul.addr 2, 55
    %s46 = scalar_lea.vmem %s0, %s45
    %v47 = vld [vmem:[%s46] sm:%s4]
    %s48 = scalar_lea.vmem [#allocation0], 440
    %49 = vst [vmem:[%s48] sm:%s4] %v47
    %s50 = smul.addr 2, 54
    %s51 = scalar_lea.vmem %s0, %s50
    %v52 = vld [vmem:[%s51] sm:%s4]
    %s53 = scalar_lea.vmem [#allocation0], 432
    %54 = vst [vmem:[%s53] sm:%s4] %v52
    %s55 = smul.addr 2, 53
    %s56 = scalar_lea.vmem %s0, %s55
    %v57 = vld [vmem:[%s56] sm:%s4]
    %s58 = scalar_lea.vmem [#allocation0], 424
    %59 = vst [vmem:[%s58] sm:%s4] %v57
    %s60 = smul.addr 2, 52
    %s61 = scalar_lea.vmem %s0, %s60
    %v62 = vld [vmem:[%s61] sm:%s4]
    %s63 = scalar_lea.vmem [#allocation0], 416
    %64 = vst [vmem:[%s63] sm:%s4] %v62
    %s65 = smul.addr 2, 51
    %s66 = scalar_lea.vmem %s0, %s65
    %v67 = vld [vmem:[%s66] sm:%s4]
    %s68 = scalar_lea.vmem [#allocation0], 408
    %69 = vst [vmem:[%s68] sm:%s4] %v67
    %s70 = smul.addr 2, 50
    %s71 = scalar_lea.vmem %s0, %s70
    %v72 = vld [vmem:[%s71] sm:%s4]
    %s73 = scalar_lea.vmem [#allocation0], 400
    %74 = vst [vmem:[%s73] sm:%s4] %v72
    %s75 = smul.addr 2, 49
    %s76 = scalar_lea.vmem %s0, %s75
    %v77 = vld [vmem:[%s76] sm:%s4]
    %s78 = scalar_lea.vmem [#allocation0], 392
    %79 = vst [vmem:[%s78] sm:%s4] %v77
    %s80 = smul.addr 2, 48
    %s81 = scalar_lea.vmem %s0, %s80
    %v82 = vld [vmem:[%s81] sm:%s4]
    %s83 = scalar_lea.vmem [#allocation0], 384
    %84 = vst [vmem:[%s83] sm:%s4] %v82
    %s85 = smul.addr 2, 47
    %s86 = scalar_lea.vmem %s0, %s85
    %v87 = vld [vmem:[%s86] sm:%s4]
    %s88 = scalar_lea.vmem [#allocation0], 376
    %89 = vst [vmem:[%s88] sm:%s4] %v87
    %s90 = smul.addr 2, 46
    %s91 = scalar_lea.vmem %s0, %s90
    %v92 = vld [vmem:[%s91] sm:%s4]
    %s93 = scalar_lea.vmem [#allocation0], 368
    %94 = vst [vmem:[%s93] sm:%s4] %v92
    %s95 = smul.addr 2, 45
    %s96 = scalar_lea.vmem %s0, %s95
    %v97 = vld [vmem:[%s96] sm:%s4]
    %s98 = scalar_lea.vmem [#allocation0], 360
    %99 = vst [vmem:[%s98] sm:%s4] %v97
    %s100 = smul.addr 2, 44
    %s101 = scalar_lea.vmem %s0, %s100
    %v102 = vld [vmem:[%s101] sm:%s4]
    %s103 = scalar_lea.vmem [#allocation0], 352
    %104 = vst [vmem:[%s103] sm:%s4] %v102
    %s105 = smul.addr 2, 43
    %s106 = scalar_lea.vmem %s0, %s105
    %v107 = vld [vmem:[%s106] sm:%s4]
    %s108 = scalar_lea.vmem [#allocation0], 344
    %109 = vst [vmem:[%s108] sm:%s4] %v107
    %s110 = smul.addr 2, 42
    %s111 = scalar_lea.vmem %s0, %s110
    %v112 = vld [vmem:[%s111] sm:%s4]
    %s113 = scalar_lea.vmem [#allocation0], 336
    %114 = vst [vmem:[%s113] sm:%s4] %v112
    %s115 = smul.addr 2, 41
    %s116 = scalar_lea.vmem %s0, %s115
    %v117 = vld [vmem:[%s116] sm:%s4]
    %s118 = scalar_lea.vmem [#allocation0], 328
    %119 = vst [vmem:[%s118] sm:%s4] %v117
    %s120 = smul.addr 2, 40
    %s121 = scalar_lea.vmem %s0, %s120
    %v122 = vld [vmem:[%s121] sm:%s4]
    %s123 = scalar_lea.vmem [#allocation0], 320
    %124 = vst [vmem:[%s123] sm:%s4] %v122
    %s125 = smul.addr 2, 39
    %s126 = scalar_lea.vmem %s0, %s125
    %v127 = vld [vmem:[%s126] sm:%s4]
    %s128 = scalar_lea.vmem [#allocation0], 312
    %129 = vst [vmem:[%s128] sm:%s4] %v127
    %s130 = smul.addr 2, 38
    %s131 = scalar_lea.vmem %s0, %s130
    %v132 = vld [vmem:[%s131] sm:%s4]
    %s133 = scalar_lea.vmem [#allocation0], 304
    %134 = vst [vmem:[%s133] sm:%s4] %v132
    %s135 = smul.addr 2, 37
    %s136 = scalar_lea.vmem %s0, %s135
    %v137 = vld [vmem:[%s136] sm:%s4]
    %s138 = scalar_lea.vmem [#allocation0], 296
    %139 = vst [vmem:[%s138] sm:%s4] %v137
    %s140 = smul.addr 2, 36
    %s141 = scalar_lea.vmem %s0, %s140
    %v142 = vld [vmem:[%s141] sm:%s4]
    %s143 = scalar_lea.vmem [#allocation0], 288
    %144 = vst [vmem:[%s143] sm:%s4] %v142
    %s145 = smul.addr 2, 35
    %s146 = scalar_lea.vmem %s0, %s145
    %v147 = vld [vmem:[%s146] sm:%s4]
    %s148 = scalar_lea.vmem [#allocation0], 280
    %149 = vst [vmem:[%s148] sm:%s4] %v147
    %s150 = smul.addr 2, 34
    %s151 = scalar_lea.vmem %s0, %s150
    %v152 = vld [vmem:[%s151] sm:%s4]
    %s153 = scalar_lea.vmem [#allocation0], 272
    %154 = vst [vmem:[%s153] sm:%s4] %v152
    %s155 = smul.addr 2, 33
    %s156 = scalar_lea.vmem %s0, %s155
    %v157 = vld [vmem:[%s156] sm:%s4]
    %s158 = scalar_lea.vmem [#allocation0], 264
    %159 = vst [vmem:[%s158] sm:%s4] %v157
    %s160 = smul.addr 2, 32
    %s161 = scalar_lea.vmem %s0, %s160
    %v162 = vld [vmem:[%s161] sm:%s4]
    %s163 = scalar_lea.vmem [#allocation0], 256
    %164 = vst [vmem:[%s163] sm:%s4] %v162
    %s165 = smul.addr 2, 31
    %s166 = scalar_lea.vmem %s0, %s165
    %v167 = vld [vmem:[%s166] sm:%s4]
    %s168 = scalar_lea.vmem [#allocation0], 248
    %169 = vst [vmem:[%s168] sm:%s4] %v167
    %s170 = smul.addr 2, 30
    %s171 = scalar_lea.vmem %s0, %s170
    %v172 = vld [vmem:[%s171] sm:%s4]
    %s173 = scalar_lea.vmem [#allocation0], 240
    %174 = vst [vmem:[%s173] sm:%s4] %v172
    %s175 = smul.addr 2, 29
    %s176 = scalar_lea.vmem %s0, %s175
    %v177 = vld [vmem:[%s176] sm:%s4]
    %s178 = scalar_lea.vmem [#allocation0], 232
    %179 = vst [vmem:[%s178] sm:%s4] %v177
    %s180 = smul.addr 2, 28
    %s181 = scalar_lea.vmem %s0, %s180
    %v182 = vld [vmem:[%s181] sm:%s4]
    %s183 = scalar_lea.vmem [#allocation0], 224
    %184 = vst [vmem:[%s183] sm:%s4] %v182
    %s185 = smul.addr 2, 27
    %s186 = scalar_lea.vmem %s0, %s185
    %v187 = vld [vmem:[%s186] sm:%s4]
    %s188 = scalar_lea.vmem [#allocation0], 216
    %189 = vst [vmem:[%s188] sm:%s4] %v187
    %s190 = smul.addr 2, 26
    %s191 = scalar_lea.vmem %s0, %s190
    %v192 = vld [vmem:[%s191] sm:%s4]
    %s193 = scalar_lea.vmem [#allocation0], 208
    %194 = vst [vmem:[%s193] sm:%s4] %v192
    %s195 = smul.addr 2, 25
    %s196 = scalar_lea.vmem %s0, %s195
    %v197 = vld [vmem:[%s196] sm:%s4]
    %s198 = scalar_lea.vmem [#allocation0], 200
    %199 = vst [vmem:[%s198] sm:%s4] %v197
    %s200 = smul.addr 2, 24
    %s201 = scalar_lea.vmem %s0, %s200
    %v202 = vld [vmem:[%s201] sm:%s4]
    %s203 = scalar_lea.vmem [#allocation0], 192
    %204 = vst [vmem:[%s203] sm:%s4] %v202
    %s205 = smul.addr 2, 23
    %s206 = scalar_lea.vmem %s0, %s205
    %v207 = vld [vmem:[%s206] sm:%s4]
    %s208 = scalar_lea.vmem [#allocation0], 184
    %209 = vst [vmem:[%s208] sm:%s4] %v207
    %s210 = smul.addr 2, 22
    %s211 = scalar_lea.vmem %s0, %s210
    %v212 = vld [vmem:[%s211] sm:%s4]
    %s213 = scalar_lea.vmem [#allocation0], 176
    %214 = vst [vmem:[%s213] sm:%s4] %v212
    %s215 = smul.addr 2, 21
    %s216 = scalar_lea.vmem %s0, %s215
    %v217 = vld [vmem:[%s216] sm:%s4]
    %s218 = scalar_lea.vmem [#allocation0], 168
    %219 = vst [vmem:[%s218] sm:%s4] %v217
    %s220 = smul.addr 2, 20
    %s221 = scalar_lea.vmem %s0, %s220
    %v222 = vld [vmem:[%s221] sm:%s4]
    %s223 = scalar_lea.vmem [#allocation0], 160
    %224 = vst [vmem:[%s223] sm:%s4] %v222
    %s225 = smul.addr 2, 19
    %s226 = scalar_lea.vmem %s0, %s225
    %v227 = vld [vmem:[%s226] sm:%s4]
    %s228 = scalar_lea.vmem [#allocation0], 152
    %229 = vst [vmem:[%s228] sm:%s4] %v227
    %s230 = smul.addr 2, 18
    %s231 = scalar_lea.vmem %s0, %s230
    %v232 = vld [vmem:[%s231] sm:%s4]
    %s233 = scalar_lea.vmem [#allocation0], 144
    %234 = vst [vmem:[%s233] sm:%s4] %v232
    %s235 = smul.addr 2, 17
    %s236 = scalar_lea.vmem %s0, %s235
    %v237 = vld [vmem:[%s236] sm:%s4]
    %s238 = scalar_lea.vmem [#allocation0], 136
    %239 = vst [vmem:[%s238] sm:%s4] %v237
    %s240 = smul.addr 2, 16
    %s241 = scalar_lea.vmem %s0, %s240
    %v242 = vld [vmem:[%s241] sm:%s4]
    %s243 = scalar_lea.vmem [#allocation0], 128
    %244 = vst [vmem:[%s243] sm:%s4] %v242
    %s245 = smul.addr 2, 15
    %s246 = scalar_lea.vmem %s0, %s245
    %v247 = vld [vmem:[%s246] sm:%s4]
    %s248 = scalar_lea.vmem [#allocation0], 120
    %249 = vst [vmem:[%s248] sm:%s4] %v247
    %s250 = smul.addr 2, 14
    %s251 = scalar_lea.vmem %s0, %s250
    %v252 = vld [vmem:[%s251] sm:%s4]
    %s253 = scalar_lea.vmem [#allocation0], 112
    %254 = vst [vmem:[%s253] sm:%s4] %v252
    %s255 = smul.addr 2, 13
    %s256 = scalar_lea.vmem %s0, %s255
    %v257 = vld [vmem:[%s256] sm:%s4]
    %s258 = scalar_lea.vmem [#allocation0], 104
    %259 = vst [vmem:[%s258] sm:%s4] %v257
    %s260 = smul.addr 2, 12
    %s261 = scalar_lea.vmem %s0, %s260
    %v262 = vld [vmem:[%s261] sm:%s4]
    %s263 = scalar_lea.vmem [#allocation0], 96
    %264 = vst [vmem:[%s263] sm:%s4] %v262
    %s265 = smul.addr 2, 11
    %s266 = scalar_lea.vmem %s0, %s265
    %v267 = vld [vmem:[%s266] sm:%s4]
    %s268 = scalar_lea.vmem [#allocation0], 88
    %269 = vst [vmem:[%s268] sm:%s4] %v267
    %s270 = smul.addr 2, 10
    %s271 = scalar_lea.vmem %s0, %s270
    %v272 = vld [vmem:[%s271] sm:%s4]
    %s273 = scalar_lea.vmem [#allocation0], 80
    %274 = vst [vmem:[%s273] sm:%s4] %v272
    %s275 = smul.addr 2, 9
    %s276 = scalar_lea.vmem %s0, %s275
    %v277 = vld [vmem:[%s276] sm:%s4]
    %s278 = scalar_lea.vmem [#allocation0], 72
    %279 = vst [vmem:[%s278] sm:%s4] %v277
    %s280 = smul.addr 2, 8
    %s281 = scalar_lea.vmem %s0, %s280
    %v282 = vld [vmem:[%s281] sm:%s4]
    %s283 = scalar_lea.vmem [#allocation0], 64
    %284 = vst [vmem:[%s283] sm:%s4] %v282
    %s285 = smul.addr 2, 7
    %s286 = scalar_lea.vmem %s0, %s285
    %v287 = vld [vmem:[%s286] sm:%s4]
    %s288 = scalar_lea.vmem [#allocation0], 56
    %289 = vst [vmem:[%s288] sm:%s4] %v287
    %s290 = smul.addr 2, 6
    %s291 = scalar_lea.vmem %s0, %s290
    %v292 = vld [vmem:[%s291] sm:%s4]
    %s293 = scalar_lea.vmem [#allocation0], 48
    %294 = vst [vmem:[%s293] sm:%s4] %v292
    %s295 = smul.addr 2, 5
    %s296 = scalar_lea.vmem %s0, %s295
    %v297 = vld [vmem:[%s296] sm:%s4]
    %s298 = scalar_lea.vmem [#allocation0], 40
    %299 = vst [vmem:[%s298] sm:%s4] %v297
    %s300 = smul.addr 2, 4
    %s301 = scalar_lea.vmem %s0, %s300
    %v302 = vld [vmem:[%s301] sm:%s4]
    %s303 = scalar_lea.vmem [#allocation0], 32
    %304 = vst [vmem:[%s303] sm:%s4] %v302
    %s305 = smul.addr 2, 3
    %s306 = scalar_lea.vmem %s0, %s305
    %v307 = vld [vmem:[%s306] sm:%s4]
    %s308 = scalar_lea.vmem [#allocation0], 24
    %309 = vst [vmem:[%s308] sm:%s4] %v307
    %s310 = smul.addr 2, 2
    %s311 = scalar_lea.vmem %s0, %s310
    %v312 = vld [vmem:[%s311] sm:%s4]
    %s313 = scalar_lea.vmem [#allocation0], 16
    %314 = vst [vmem:[%s313] sm:%s4] %v312
    %s315 = scalar_lea.vmem %s0, 2
    %v316 = vld [vmem:[%s315] sm:%s4]
    %s317 = scalar_lea.vmem [#allocation0], 8
    %318 = vst [vmem:[%s317] sm:%s4] %v316
    %v319 = vld [vmem:[%s0] sm:%s4]
    %320 = vst [vmem:[#allocation0] sm:%s4] %v319
    %v321 = vld [vmem:[#allocation0] ss:$8 sm:$0xf]
    %v322 = vld [vmem:[#allocation0] ss:$8 sm:$0xf0]
    %vm323 = vcmask 1047556
    %v324 = vsel %vm323, %v322, %v321
    %vm325 = vcmask 523264
    %326 = vst.msk [vmem:[%s1] sm:$0xff] %vm325, %v324
    %s327 = scalar_lea.vmem [#allocation0], 64
    %v328 = vld [vmem:[%s327] ss:$8 sm:$0xf]
    %s329 = scalar_lea.vmem [#allocation0], 64
    %v330 = vld [vmem:[%s329] ss:$8 sm:$0xf0]
    %vm331 = vcmask 1047556
    %v332 = vsel %vm331, %v330, %v328
    %vm333 = vcmask 523264
    %s334 = scalar_lea.vmem %s1, 8
    %335 = vst.msk [vmem:[%s334] sm:$0xff] %vm333, %v332
    %s336 = scalar_lea.vmem [#allocation0], 128
    %v337 = vld [vmem:[%s336] ss:$8 sm:$0xf]
    %s338 = scalar_lea.vmem [#allocation0], 128
    %v339 = vld [vmem:[%s338] ss:$8 sm:$0xf0]
    %vm340 = vcmask 1047556
    %v341 = vsel %vm340, %v339, %v337
    %vm342 = vcmask 523264
    %s343 = scalar_lea.vmem %s1, 16
    %344 = vst.msk [vmem:[%s343] sm:$0xff] %vm342, %v341
    %s345 = scalar_lea.vmem [#allocation0], 192
    %v346 = vld [vmem:[%s345] ss:$8 sm:$0xf]
    %s347 = scalar_lea.vmem [#allocation0], 192
    %v348 = vld [vmem:[%s347] ss:$8 sm:$0xf0]
    %vm349 = vcmask 1047556
    %v350 = vsel %vm349, %v348, %v346
    %vm351 = vcmask 523264
    %s352 = scalar_lea.vmem %s1, 24
    %353 = vst.msk [vmem:[%s352] sm:$0xff] %vm351, %v350
    %s354 = scalar_lea.vmem [#allocation0], 256
    %v355 = vld [vmem:[%s354] ss:$8 sm:$0xf]
    %s356 = scalar_lea.vmem [#allocation0], 256
    %v357 = vld [vmem:[%s356] ss:$8 sm:$0xf0]
    %vm358 = vcmask 1047556
    %v359 = vsel %vm358, %v357, %v355
    %vm360 = vcmask 523264
    %s361 = scalar_lea.vmem %s1, 32
    %362 = vst.msk [vmem:[%s361] sm:$0xff] %vm360, %v359
    %s363 = scalar_lea.vmem [#allocation0], 320
    %v364 = vld [vmem:[%s363] ss:$8 sm:$0xf]
    %s365 = scalar_lea.vmem [#allocation0], 320
    %v366 = vld [vmem:[%s365] ss:$8 sm:$0xf0]
    %vm367 = vcmask 1047556
    %v368 = vsel %vm367, %v366, %v364
    %vm369 = vcmask 523264
    %s370 = scalar_lea.vmem %s1, 40
    %371 = vst.msk [vmem:[%s370] sm:$0xff] %vm369, %v368
    %s372 = scalar_lea.vmem [#allocation0], 384
    %v373 = vld [vmem:[%s372] ss:$8 sm:$0xf]
    %s374 = scalar_lea.vmem [#allocation0], 384
    %v375 = vld [vmem:[%s374] ss:$8 sm:$0xf0]
    %vm376 = vcmask 1047556
    %v377 = vsel %vm376, %v375, %v373
    %vm378 = vcmask 523264
    %s379 = scalar_lea.vmem %s1, 48
    %380 = vst.msk [vmem:[%s379] sm:$0xff] %vm378, %v377
    %s381 = scalar_lea.vmem [#allocation0], 448
    %v382 = vld [vmem:[%s381] ss:$8 sm:$0xf]
    %s383 = scalar_lea.vmem [#allocation0], 448
    %v384 = vld [vmem:[%s383] ss:$8 sm:$0xf0]
    %vm385 = vcmask 1047556
    %v386 = vsel %vm385, %v384, %v382
    %vm387 = vcmask 523264
    %s388 = scalar_lea.vmem %s1, 56
    %389 = vst.msk [vmem:[%s388] sm:$0xff] %vm387, %v386
    %s390 = scalar_lea.vmem [#allocation0], 1
    %v391 = vld [vmem:[%s390] ss:$8 sm:$0xf]
    %s392 = scalar_lea.vmem [#allocation0], 1
    %v393 = vld [vmem:[%s392] ss:$8 sm:$0xf0]
    %vm394 = vcmask 1047556
    %v395 = vsel %vm394, %v393, %v391
    %396 = vrot.lane.b32.xlu0 %v395, 64
    %v397 = vpop.permute.xlu0 %396
    %vm398 = vcmask 1048064
    %399 = vst.msk [vmem:[%s1] sm:$0xff] %vm398, %v397
    %s400 = scalar_lea.vmem [#allocation0], 257
    %v401 = vld [vmem:[%s400] ss:$8 sm:$0xf]
    %s402 = scalar_lea.vmem [#allocation0], 257
    %v403 = vld [vmem:[%s402] ss:$8 sm:$0xf0]
    %vm404 = vcmask 1047556
    %v405 = vsel %vm404, %v403, %v401
    %406 = vrot.lane.b32.xlu0 %v405, 64
    %v407 = vpop.permute.xlu0 %406
    %vm408 = vcmask 1048064
    %s409 = scalar_lea.vmem %s1, 32
    %410 = vst.msk [vmem:[%s409] sm:$0xff] %vm408, %v407
    %s411 = scalar_lea.vmem [#allocation0], 65
    %v412 = vld [vmem:[%s411] ss:$8 sm:$0xf]
    %s413 = scalar_lea.vmem [#allocation0], 65
    %v414 = vld [vmem:[%s413] ss:$8 sm:$0xf0]
    %vm415 = vcmask 1047556
    %v416 = vsel %vm415, %v414, %v412
    %417 = vrot.lane.b32.xlu0 %v416, 64
    %v418 = vpop.permute.xlu0 %417
    %vm419 = vcmask 1048064
    %s420 = scalar_lea.vmem %s1, 8
    %421 = vst.msk [vmem:[%s420] sm:$0xff] %vm419, %v418
    %s422 = scalar_lea.vmem [#allocation0], 321
    %v423 = vld [vmem:[%s422] ss:$8 sm:$0xf]
    %s424 = scalar_lea.vmem [#allocation0], 321
    %v425 = vld [vmem:[%s424] ss:$8 sm:$0xf0]
    %vm426 = vcmask 1047556
    %v427 = vsel %vm426, %v425, %v423
    %428 = vrot.lane.b32.xlu0 %v427, 64
    %v429 = vpop.permute.xlu0 %428
    %vm430 = vcmask 1048064
    %s431 = scalar_lea.vmem %s1, 40
    %432 = vst.msk [vmem:[%s431] sm:$0xff] %vm430, %v429
    %s433 = scalar_lea.vmem [#allocation0], 129
    %v434 = vld [vmem:[%s433] ss:$8 sm:$0xf]
    %s435 = scalar_lea.vmem [#allocation0], 129
    %v436 = vld [vmem:[%s435] ss:$8 sm:$0xf0]
    %vm437 = vcmask 1047556
    %v438 = vsel %vm437, %v436, %v434
    %439 = vrot.lane.b32.xlu0 %v438, 64
    %v440 = vpop.permute.xlu0 %439
    %vm441 = vcmask 1048064
    %s442 = scalar_lea.vmem %s1, 16
    %443 = vst.msk [vmem:[%s442] sm:$0xff] %vm441, %v440
    %s444 = scalar_lea.vmem [#allocation0], 385
    %v445 = vld [vmem:[%s444] ss:$8 sm:$0xf]
    %s446 = scalar_lea.vmem [#allocation0], 385
    %v447 = vld [vmem:[%s446] ss:$8 sm:$0xf0]
    %vm448 = vcmask 1047556
    %v449 = vsel %vm448, %v447, %v445
    %450 = vrot.lane.b32.xlu0 %v449, 64
    %v451 = vpop.permute.xlu0 %450
    %vm452 = vcmask 1048064
    %s453 = scalar_lea.vmem %s1, 48
    %454 = vst.msk [vmem:[%s453] sm:$0xff] %vm452, %v451
    %s455 = scalar_lea.vmem [#allocation0], 193
    %v456 = vld [vmem:[%s455] ss:$8 sm:$0xf]
    %s457 = scalar_lea.vmem [#allocation0], 193
    %v458 = vld [vmem:[%s457] ss:$8 sm:$0xf0]
    %vm459 = vcmask 1047556
    %v460 = vsel %vm459, %v458, %v456
    %461 = vrot.lane.b32.xlu0 %v460, 64
    %v462 = vpop.permute.xlu0 %461
    %vm463 = vcmask 1048064
    %s464 = scalar_lea.vmem %s1, 24
    %465 = vst.msk [vmem:[%s464] sm:$0xff] %vm463, %v462
    %s466 = scalar_lea.vmem [#allocation0], 449
    %v467 = vld [vmem:[%s466] ss:$8 sm:$0xf]
    %s468 = scalar_lea.vmem [#allocation0], 449
    %v469 = vld [vmem:[%s468] ss:$8 sm:$0xf0]
    %vm470 = vcmask 1047556
    %v471 = vsel %vm470, %v469, %v467
    %472 = vrot.lane.b32.xlu0 %v471, 64
    %v473 = vpop.permute.xlu0 %472
    %vm474 = vcmask 1048064
    %s475 = scalar_lea.vmem %s1, 56
    %476 = vst.msk [vmem:[%s475] sm:$0xff] %vm474, %v473

// kernel: autoencoder_forward.1
$region0: #{autoencoder_forward.1}
  #allocation0 [shape = 'u32[]', space=smem, size = 0x4, offset = 0x4, fixed_abs, tag = 'smem constant byte address 0x4 - core index']
  #allocation1 [shape = 'u32[144,128]{1,0:T(1,128)}', space=vmem, size = 0x12000, scoped, tag = 'internal scratch']
  %s0 = inlined_call_operand.vmem [shape: f32[1,16,128], index: 0, kind: input, shape index: {}]
  %s1 = inlined_call_operand.vmem [shape: f32[128,48], index: 1, kind: input, shape index: {}]
  %s2 = inlined_call_operand.vmem [shape: f32[32,64], index: 2, kind: input, shape index: {}]
  %s3 = inlined_call_operand.vmem [shape: f32[64,128], index: 3, kind: input, shape index: {}]
  %s4 = inlined_call_operand.vmem [shape: f32[4,10], index: 4, kind: input, shape index: {}]
  %s5 = inlined_call_operand.vmem [shape: f32[32,12], index: 5, kind: input, shape index: {}]
  %s6 = inlined_call_operand.vmem [shape: f32[16,48], index: 6, kind: input, shape index: {}]
  %s7 = inlined_call_operand.vmem [shape: f32[16,128], index: 7, kind: input, shape index: {}]
  %s8 = inlined_call_operand.vmem [shape: f32[8,128], index: 8, kind: input, shape index: {}]
  %s9 = inlined_call_operand.vmem [shape: f32[1,16,128], index: 9, kind: output, shape index: {}]
  %s10 = sld [smem:[#allocation0]]
  $region46: #{autoencoder_forward.1} parent=0
    _
  %s12 = ssub.s32 1, %s10
  %s13 = scalar_select 0, %s12, %s10
  // Predicated region
  $region2: #{autoencoder_forward.1} parent=0 // pred_check
    _
  $region3: #{autoencoder_forward.1} parent=0 // pred_check_branch
    %15 = sbr.rel (0) target = $region5
  $region4: #{autoencoder_forward.1} parent=0 // pred_region
    _
  $region5: #{autoencoder_forward.1} parent=0 // pred_fallthru
    _
  // Predicated region
  $region6: #{autoencoder_forward.1} parent=0 // pred_check
    _
  $region7: #{autoencoder_forward.1} parent=0 // pred_check_branch
    %17 = sbr.rel (0) target = $region9
  $region8: #{autoencoder_forward.1} parent=0 // pred_region
    _
  $region9: #{autoencoder_forward.1} parent=0 // pred_fallthru
    _
  // Predicated region
  $region10: #{autoencoder_forward.1} parent=0 // pred_check
    _
  $region11: #{autoencoder_forward.1} parent=0 // pred_check_branch
    %19 = sbr.rel (0) target = $region13
  $region12: #{autoencoder_forward.1} parent=0 // pred_region
    _
  $region13: #{autoencoder_forward.1} parent=0 // pred_fallthru
    _
  // Predicated region
  $region14: #{autoencoder_forward.1} parent=0 // pred_check
    _
  $region15: #{autoencoder_forward.1} parent=0 // pred_check_branch
    %21 = sbr.rel (0) target = $region17
  $region16: #{autoencoder_forward.1} parent=0 // pred_region
    _
  $region17: #{autoencoder_forward.1} parent=0 // pred_fallthru
    _
  // Predicated region
  $region18: #{autoencoder_forward.1} parent=0 // pred_check
    _
  $region19: #{autoencoder_forward.1} parent=0 // pred_check_branch
    %23 = sbr.rel (0) target = $region21
  $region20: #{autoencoder_forward.1} parent=0 // pred_region
    _
  $region21: #{autoencoder_forward.1} parent=0 // pred_fallthru
    _
  // Predicated region
  $region22: #{autoencoder_forward.1} parent=0 // pred_check
    _
  $region23: #{autoencoder_forward.1} parent=0 // pred_check_branch
    %25 = sbr.rel (0) target = $region25
  $region24: #{autoencoder_forward.1} parent=0 // pred_region
    _
  $region25: #{autoencoder_forward.1} parent=0 // pred_fallthru
    _
  // Predicated region
  $region26: #{autoencoder_forward.1} parent=0 // pred_check
    _
  $region27: #{autoencoder_forward.1} parent=0 // pred_check_branch
    %27 = sbr.rel (0) target = $region29
  $region28: #{autoencoder_forward.1} parent=0 // pred_region
    _
  $region29: #{autoencoder_forward.1} parent=0 // pred_fallthru
    _
  // Predicated region
  $region30: #{autoencoder_forward.1} parent=0 // pred_check
    _
  $region31: #{autoencoder_forward.1} parent=0 // pred_check_branch
    %29 = sbr.rel (0) target = $region33
  $region32: #{autoencoder_forward.1} parent=0 // pred_region
    _
  $region33: #{autoencoder_forward.1} parent=0 // pred_fallthru
    _
  // Predicated region
  $region34: #{autoencoder_forward.1} parent=0 // pred_check
    _
  $region35: #{autoencoder_forward.1} parent=0 // pred_check_branch
    %31 = sbr.rel (0) target = $region37
  $region36: #{autoencoder_forward.1} parent=0 // pred_region
    _
  $region37: #{autoencoder_forward.1} parent=0 // pred_fallthru
    _
  %v32 = vld [vmem:[%s8] sm:$0xff]
  %v33 = vld [vmem:[%s0] sm:$0xff]
  %v34 = vld [vmem:[%s0 + $0x8] sm:$0xff]
  %37 = vrot.lane.b32.xlu0 %v33, 1
  %v38 = vpop.permute.xlu0 %37
  %39 = vrot.lane.b32.xlu0 %v34, 1
  %v40 = vpop.permute.xlu0 %39
  %vm43 = vcmask 7168
  %v44 = vsel %vm43, 0.0, %v38
  %v45 = vsel %vm43, 0.0, %v40
  %v46 = vlaneseq
  %v47 = vshrl.u32 %v46, 7
  %v48 = vsub.s32 1, %v47
  %v49 = vrot.slane %v32, %v48
  %v50 = vmul.f32 %v44, %v49
  %v51 = vmul.f32 %v45, %v49
  %52 = vrot.lane.b32.xlu0 %v33, 127
  %v53 = vpop.permute.xlu0 %52
  %54 = vrot.lane.b32.xlu0 %v34, 127
  %v55 = vpop.permute.xlu0 %54
  %vm58 = vcmask 1039360
  %v59 = vsel %vm58, %v53, 0.0
  %v60 = vsel %vm58, %v55, 0.0
  %v61 = vlaneseq
  %v62 = vshrl.u32 %v61, 7
  %v63 = vsub.s32 2, %v62
  %v64 = vrot.slane %v32, %v63
  %v65 = vmul.f32 %v59, %v64
  %v66 = vmul.f32 %v60, %v64
  %v67 = vld [vmem:[%s1] sm:$0xff]
  %v68 = vld [vmem:[%s1 + $0x8] sm:$0xff]
  %v69 = vld [vmem:[%s1 + $0x10] sm:$0xff]
  %v70 = vld [vmem:[%s1 + $0x18] sm:$0xff]
  %vm71 = vcmask 392192
  %v73 = vsel %vm71, %v67, 0
  %v76 = vsel %vm71, %v68, 0
  %v79 = vsel %vm71, %v69, 0
  %v82 = vsel %vm71, %v70, 0
  %84 = vmatprep.subr.mxu0 0.0
  %85 = vmatpush1.msra.mxu0 0.0
  %86 = vmatprep.subr.mxu0 0.0
  %87 = vmatpush1.msra.mxu0 0.0
  %88 = vmatprep.subr.mxu0 0.0
  %89 = vmatpush1.msra.mxu0 0.0
  %90 = vmatprep.subr.mxu0 0.0
  %91 = vmatpush1.msra.mxu0 0.0
  %92 = vmatprep.subr.mxu0 0.0
  %93 = vmatpush1.msra.mxu0 0.0
  %94 = vmatprep.subr.mxu0 0.0
  %95 = vmatpush1.msra.mxu0 0.0
  %96 = vmatprep.subr.mxu0 0.0
  %97 = vmatpush1.msra.mxu0 0.0
  %98 = vmatprep.subr.mxu0 0.0
  %99 = vmatpush1.msra.mxu0 0.0
  %100 = vmatprep.subr.mxu0 0.0
  %101 = vmatpush1.msra.mxu0 0.0
  %102 = vmatprep.subr.mxu0 0.0
  %103 = vmatpush1.msra.mxu0 0.0
  %104 = vmatprep.subr.mxu0 0.0
  %105 = vmatpush1.msra.mxu0 %v66
  %106 = vmatprep.subr.mxu0 0.0
  %107 = vmatpush1.msra.mxu0 %v65
  %108 = vmatprep.subr.mxu0 0.0
  %109 = vmatpush1.msra.mxu0 %v34
  %110 = vmatprep.subr.mxu0 0.0
  %111 = vmatpush1.msra.mxu0 %v33
  %112 = vmatprep.subr.mxu0 0.0
  %113 = vmatpush1.msra.mxu0 %v51
  %114 = vmatprep.subr.mxu0 0.0
  %115 = vmatpush1.msra.mxu0 %v50
  %116 = vmatprep.subr.mxu0 0.0
  %117 = vmatpush2.msra.mxu0 0.0
  %118 = vmatprep.subr.mxu0 0.0
  %119 = vmatpush2.msra.mxu0 0.0
  %120 = vmatprep.subr.mxu0 0.0
  %121 = vmatpush2.msra.mxu0 0.0
  %122 = vmatprep.subr.mxu0 0.0
  %123 = vmatpush2.msra.mxu0 0.0
  %124 = vmatprep.subr.mxu0 0.0
  %125 = vmatpush2.msra.mxu0 0.0
  %126 = vmatprep.subr.mxu0 0.0
  %127 = vmatpush2.msra.mxu0 0.0
  %128 = vmatprep.subr.mxu0 0.0
  %129 = vmatpush2.msra.mxu0 0.0
  %130 = vmatprep.subr.mxu0 0.0
  %131 = vmatpush2.msra.mxu0 0.0
  %132 = vmatprep.subr.mxu0 0.0
  %133 = vmatpush2.msra.mxu0 0.0
  %134 = vmatprep.subr.mxu0 0.0
  %135 = vmatpush2.msra.mxu0 0.0
  %136 = vmatprep.subr.mxu0 0.0
  %137 = vmatpush2.msra.mxu0 0.0
  %138 = vmatprep.subr.mxu0 0.0
  %139 = vmatpush2.msra.mxu0 0.0
  %140 = vmatprep.subr.mxu0 0.0
  %141 = vmatpush2.msra.mxu0 0.0
  %142 = vmatprep.subr.mxu0 0.0
  %143 = vmatpush2.msra.mxu0 0.0
  %144 = vmatprep.subr.mxu0 0.0
  %145 = vmatpush2.msra.mxu0 0.0
  %146 = vmatprep.subr.mxu0 0.0
  %147 = vmatpush2.msra.mxu0 0.0
  %148 = vmatprep.mubr.f32.mxu0 0.0
  %149 = vmatmul.mubr.f32.gmra.mxu0 %v73
  %v150 = vpop.f32.mrf.mxu0
  %v151 = vadd.f32 0.0, %v150
  %v152 = vpop.f32.mrf.mxu0
  %153 = vmatprep.mubr.f32.mxu0 0.0
  %154 = vmatmul.mubr.f32.gmra.mxu0 %v76
  %v155 = vpop.f32.mrf.mxu0
  %v156 = vadd.f32 0.0, %v155
  %v157 = vpop.f32.mrf.mxu0
  %158 = vmatprep.mubr.f32.mxu0 0.0
  %159 = vmatmul.mubr.f32.gmra.mxu0 %v79
  %v160 = vpop.f32.mrf.mxu0
  %v161 = vadd.f32 0.0, %v160
  %v162 = vpop.f32.mrf.mxu0
  %163 = vmatprep.mubr.f32.mxu0 0.0
  %164 = vmatmul.mubr.f32.gmra.mxu0 %v82
  %v165 = vpop.f32.mrf.mxu0
  %v166 = vadd.f32 0.0, %v165
  %v167 = vpop.f32.mrf.mxu0
  %168 = vdwg.mxu0
  %v169 = vmax.f32 %v151, %v156
  %v170 = vmax.f32 %v161, %v166
  %v171 = vmax.f32 %v169, %v170
  %v172 = vmul.f32 %v171, 0.2
  %v173 = vmax.f32 %v171, %v172
  %v174 = vld [vmem:[%s1 + $0x20] sm:$0xff]
  %v175 = vld [vmem:[%s1 + $0x28] sm:$0xff]
  %v176 = vld [vmem:[%s1 + $0x30] sm:$0xff]
  %v177 = vld [vmem:[%s1 + $0x38] sm:$0xff]
  %v179 = vsel %vm71, %v174, 0
  %v182 = vsel %vm71, %v175, 0
  %v185 = vsel %vm71, %v176, 0
  %v188 = vsel %vm71, %v177, 0
  %190 = vmatprep.subr.mxu0 0.0
  %191 = vmatpush1.msra.mxu0 0.0
  %192 = vmatprep.subr.mxu0 0.0
  %193 = vmatpush1.msra.mxu0 0.0
  %194 = vmatprep.subr.mxu0 0.0
  %195 = vmatpush1.msra.mxu0 0.0
  %196 = vmatprep.subr.mxu0 0.0
  %197 = vmatpush1.msra.mxu0 0.0
  %198 = vmatprep.subr.mxu0 0.0
  %199 = vmatpush1.msra.mxu0 0.0
  %200 = vmatprep.subr.mxu0 0.0
  %201 = vmatpush1.msra.mxu0 0.0
  %202 = vmatprep.subr.mxu0 0.0
  %203 = vmatpush1.msra.mxu0 0.0
  %204 = vmatprep.subr.mxu0 0.0
  %205 = vmatpush1.msra.mxu0 0.0
  %206 = vmatprep.subr.mxu0 0.0
  %207 = vmatpush1.msra.mxu0 0.0
  %208 = vmatprep.subr.mxu0 0.0
  %209 = vmatpush1.msra.mxu0 0.0
  %210 = vmatprep.subr.mxu0 0.0
  %211 = vmatpush1.msra.mxu0 %v66
  %212 = vmatprep.subr.mxu0 0.0
  %213 = vmatpush1.msra.mxu0 %v65
  %214 = vmatprep.subr.mxu0 0.0
  %215 = vmatpush1.msra.mxu0 %v34
  %216 = vmatprep.subr.mxu0 0.0
  %217 = vmatpush1.msra.mxu0 %v33
  %218 = vmatprep.subr.mxu0 0.0
  %219 = vmatpush1.msra.mxu0 %v51
  %220 = vmatprep.subr.mxu0 0.0
  %221 = vmatpush1.msra.mxu0 %v50
  %222 = vmatprep.subr.mxu0 0.0
  %223 = vmatpush2.msra.mxu0 0.0
  %224 = vmatprep.subr.mxu0 0.0
  %225 = vmatpush2.msra.mxu0 0.0
  %226 = vmatprep.subr.mxu0 0.0
  %227 = vmatpush2.msra.mxu0 0.0
  %228 = vmatprep.subr.mxu0 0.0
  %229 = vmatpush2.msra.mxu0 0.0
  %230 = vmatprep.subr.mxu0 0.0
  %231 = vmatpush2.msra.mxu0 0.0
  %232 = vmatprep.subr.mxu0 0.0
  %233 = vmatpush2.msra.mxu0 0.0
  %234 = vmatprep.subr.mxu0 0.0
  %235 = vmatpush2.msra.mxu0 0.0
  %236 = vmatprep.subr.mxu0 0.0
  %237 = vmatpush2.msra.mxu0 0.0
  %238 = vmatprep.subr.mxu0 0.0
  %239 = vmatpush2.msra.mxu0 0.0
  %240 = vmatprep.subr.mxu0 0.0
  %241 = vmatpush2.msra.mxu0 0.0
  %242 = vmatprep.subr.mxu0 0.0
  %243 = vmatpush2.msra.mxu0 0.0
  %244 = vmatprep.subr.mxu0 0.0
  %245 = vmatpush2.msra.mxu0 0.0
  %246 = vmatprep.subr.mxu0 0.0
  %247 = vmatpush2.msra.mxu0 0.0
  %248 = vmatprep.subr.mxu0 0.0
  %249 = vmatpush2.msra.mxu0 0.0
  %250 = vmatprep.subr.mxu0 0.0
  %251 = vmatpush2.msra.mxu0 0.0
  %252 = vmatprep.subr.mxu0 0.0
  %253 = vmatpush2.msra.mxu0 0.0
  %254 = vmatprep.mubr.f32.mxu0 0.0
  %255 = vmatmul.mubr.f32.gmra.mxu0 %v179
  %v256 = vpop.f32.mrf.mxu0
  %v257 = vadd.f32 0.0, %v256
  %v258 = vpop.f32.mrf.mxu0
  %259 = vmatprep.mubr.f32.mxu0 0.0
  %260 = vmatmul.mubr.f32.gmra.mxu0 %v182
  %v261 = vpop.f32.mrf.mxu0
  %v262 = vadd.f32 0.0, %v261
  %v263 = vpop.f32.mrf.mxu0
  %264 = vmatprep.mubr.f32.mxu0 0.0
  %265 = vmatmul.mubr.f32.gmra.mxu0 %v185
  %v266 = vpop.f32.mrf.mxu0
  %v267 = vadd.f32 0.0, %v266
  %v268 = vpop.f32.mrf.mxu0
  %269 = vmatprep.mubr.f32.mxu0 0.0
  %270 = vmatmul.mubr.f32.gmra.mxu0 %v188
  %v271 = vpop.f32.mrf.mxu0
  %v272 = vadd.f32 0.0, %v271
  %v273 = vpop.f32.mrf.mxu0
  %274 = vdwg.mxu0
  %v275 = vmax.f32 %v257, %v262
  %v276 = vmax.f32 %v267, %v272
  %v277 = vmax.f32 %v275, %v276
  %v278 = vmul.f32 %v277, 0.2
  %v279 = vmax.f32 %v277, %v278
  %v280 = vld [vmem:[%s1 + $0x40] sm:$0xff]
  %v281 = vld [vmem:[%s1 + $0x48] sm:$0xff]
  %v282 = vld [vmem:[%s1 + $0x50] sm:$0xff]
  %v283 = vld [vmem:[%s1 + $0x58] sm:$0xff]
  %v285 = vsel %vm71, %v280, 0
  %v288 = vsel %vm71, %v281, 0
  %v291 = vsel %vm71, %v282, 0
  %v294 = vsel %vm71, %v283, 0
  %296 = vmatprep.subr.mxu0 0.0
  %297 = vmatpush1.msra.mxu0 0.0
  %298 = vmatprep.subr.mxu0 0.0
  %299 = vmatpush1.msra.mxu0 0.0
  %300 = vmatprep.subr.mxu0 0.0
  %301 = vmatpush1.msra.mxu0 0.0
  %302 = vmatprep.subr.mxu0 0.0
  %303 = vmatpush1.msra.mxu0 0.0
  %304 = vmatprep.subr.mxu0 0.0
  %305 = vmatpush1.msra.mxu0 0.0
  %306 = vmatprep.subr.mxu0 0.0
  %307 = vmatpush1.msra.mxu0 0.0
  %308 = vmatprep.subr.mxu0 0.0
  %309 = vmatpush1.msra.mxu0 0.0
  %310 = vmatprep.subr.mxu0 0.0
  %311 = vmatpush1.msra.mxu0 0.0
  %312 = vmatprep.subr.mxu0 0.0
  %313 = vmatpush1.msra.mxu0 0.0
  %314 = vmatprep.subr.mxu0 0.0
  %315 = vmatpush1.msra.mxu0 0.0
  %316 = vmatprep.subr.mxu0 0.0
  %317 = vmatpush1.msra.mxu0 %v66
  %318 = vmatprep.subr.mxu0 0.0
  %319 = vmatpush1.msra.mxu0 %v65
  %320 = vmatprep.subr.mxu0 0.0
  %321 = vmatpush1.msra.mxu0 %v34
  %322 = vmatprep.subr.mxu0 0.0
  %323 = vmatpush1.msra.mxu0 %v33
  %324 = vmatprep.subr.mxu0 0.0
  %325 = vmatpush1.msra.mxu0 %v51
  %326 = vmatprep.subr.mxu0 0.0
  %327 = vmatpush1.msra.mxu0 %v50
  %328 = vmatprep.subr.mxu0 0.0
  %329 = vmatpush2.msra.mxu0 0.0
  %330 = vmatprep.subr.mxu0 0.0
  %331 = vmatpush2.msra.mxu0 0.0
  %332 = vmatprep.subr.mxu0 0.0
  %333 = vmatpush2.msra.mxu0 0.0
  %334 = vmatprep.subr.mxu0 0.0
  %335 = vmatpush2.msra.mxu0 0.0
  %336 = vmatprep.subr.mxu0 0.0
  %337 = vmatpush2.msra.mxu0 0.0
  %338 = vmatprep.subr.mxu0 0.0
  %339 = vmatpush2.msra.mxu0 0.0
  %340 = vmatprep.subr.mxu0 0.0
  %341 = vmatpush2.msra.mxu0 0.0
  %342 = vmatprep.subr.mxu0 0.0
  %343 = vmatpush2.msra.mxu0 0.0
  %344 = vmatprep.subr.mxu0 0.0
  %345 = vmatpush2.msra.mxu0 0.0
  %346 = vmatprep.subr.mxu0 0.0
  %347 = vmatpush2.msra.mxu0 0.0
  %348 = vmatprep.subr.mxu0 0.0
  %349 = vmatpush2.msra.mxu0 0.0
  %350 = vmatprep.subr.mxu0 0.0
  %351 = vmatpush2.msra.mxu0 0.0
  %352 = vmatprep.subr.mxu0 0.0
  %353 = vmatpush2.msra.mxu0 0.0
  %354 = vmatprep.subr.mxu0 0.0
  %355 = vmatpush2.msra.mxu0 0.0
  %356 = vmatprep.subr.mxu0 0.0
  %357 = vmatpush2.msra.mxu0 0.0
  %358 = vmatprep.subr.mxu0 0.0
  %359 = vmatpush2.msra.mxu0 0.0
  %360 = vmatprep.mubr.f32.mxu0 0.0
  %361 = vmatmul.mubr.f32.gmra.mxu0 %v285
  %v362 = vpop.f32.mrf.mxu0
  %v363 = vadd.f32 0.0, %v362
  %v364 = vpop.f32.mrf.mxu0
  %365 = vmatprep.mubr.f32.mxu0 0.0
  %366 = vmatmul.mubr.f32.gmra.mxu0 %v288
  %v367 = vpop.f32.mrf.mxu0
  %v368 = vadd.f32 0.0, %v367
  %v369 = vpop.f32.mrf.mxu0
  %370 = vmatprep.mubr.f32.mxu0 0.0
  %371 = vmatmul.mubr.f32.gmra.mxu0 %v291
  %v372 = vpop.f32.mrf.mxu0
  %v373 = vadd.f32 0.0, %v372
  %v374 = vpop.f32.mrf.mxu0
  %375 = vmatprep.mubr.f32.mxu0 0.0
  %376 = vmatmul.mubr.f32.gmra.mxu0 %v294
  %v377 = vpop.f32.mrf.mxu0
  %v378 = vadd.f32 0.0, %v377
  %v379 = vpop.f32.mrf.mxu0
  %380 = vdwg.mxu0
  %v381 = vmax.f32 %v363, %v368
  %v382 = vmax.f32 %v373, %v378
  %v383 = vmax.f32 %v381, %v382
  %v384 = vmul.f32 %v383, 0.2
  %v385 = vmax.f32 %v383, %v384
  %v386 = vld [vmem:[%s1 + $0x60] sm:$0xff]
  %v387 = vld [vmem:[%s1 + $0x68] sm:$0xff]
  %v388 = vld [vmem:[%s1 + $0x70] sm:$0xff]
  %v389 = vld [vmem:[%s1 + $0x78] sm:$0xff]
  %v391 = vsel %vm71, %v386, 0
  %v394 = vsel %vm71, %v387, 0
  %v397 = vsel %vm71, %v388, 0
  %v400 = vsel %vm71, %v389, 0
  %402 = vmatprep.subr.mxu0 0.0
  %403 = vmatpush1.msra.mxu0 0.0
  %404 = vmatprep.subr.mxu0 0.0
  %405 = vmatpush1.msra.mxu0 0.0
  %406 = vmatprep.subr.mxu0 0.0
  %407 = vmatpush1.msra.mxu0 0.0
  %408 = vmatprep.subr.mxu0 0.0
  %409 = vmatpush1.msra.mxu0 0.0
  %410 = vmatprep.subr.mxu0 0.0
  %411 = vmatpush1.msra.mxu0 0.0
  %412 = vmatprep.subr.mxu0 0.0
  %413 = vmatpush1.msra.mxu0 0.0
  %414 = vmatprep.subr.mxu0 0.0
  %415 = vmatpush1.msra.mxu0 0.0
  %416 = vmatprep.subr.mxu0 0.0
  %417 = vmatpush1.msra.mxu0 0.0
  %418 = vmatprep.subr.mxu0 0.0
  %419 = vmatpush1.msra.mxu0 0.0
  %420 = vmatprep.subr.mxu0 0.0
  %421 = vmatpush1.msra.mxu0 0.0
  %422 = vmatprep.subr.mxu0 0.0
  %423 = vmatpush1.msra.mxu0 %v66
  %424 = vmatprep.subr.mxu0 0.0
  %425 = vmatpush1.msra.mxu0 %v65
  %426 = vmatprep.subr.mxu0 0.0
  %427 = vmatpush1.msra.mxu0 %v34
  %428 = vmatprep.subr.mxu0 0.0
  %429 = vmatpush1.msra.mxu0 %v33
  %430 = vmatprep.subr.mxu0 0.0
  %431 = vmatpush1.msra.mxu0 %v51
  %432 = vmatprep.subr.mxu0 0.0
  %433 = vmatpush1.msra.mxu0 %v50
  %434 = vmatprep.subr.mxu0 0.0
  %435 = vmatpush2.msra.mxu0 0.0
  %436 = vmatprep.subr.mxu0 0.0
  %437 = vmatpush2.msra.mxu0 0.0
  %438 = vmatprep.subr.mxu0 0.0
  %439 = vmatpush2.msra.mxu0 0.0
  %440 = vmatprep.subr.mxu0 0.0
  %441 = vmatpush2.msra.mxu0 0.0
  %442 = vmatprep.subr.mxu0 0.0
  %443 = vmatpush2.msra.mxu0 0.0
  %444 = vmatprep.subr.mxu0 0.0
  %445 = vmatpush2.msra.mxu0 0.0
  %446 = vmatprep.subr.mxu0 0.0
  %447 = vmatpush2.msra.mxu0 0.0
  %448 = vmatprep.subr.mxu0 0.0
  %449 = vmatpush2.msra.mxu0 0.0
  %450 = vmatprep.subr.mxu0 0.0
  %451 = vmatpush2.msra.mxu0 0.0
  %452 = vmatprep.subr.mxu0 0.0
  %453 = vmatpush2.msra.mxu0 0.0
  %454 = vmatprep.subr.mxu0 0.0
  %455 = vmatpush2.msra.mxu0 0.0
  %456 = vmatprep.subr.mxu0 0.0
  %457 = vmatpush2.msra.mxu0 0.0
  %458 = vmatprep.subr.mxu0 0.0
  %459 = vmatpush2.msra.mxu0 0.0
  %460 = vmatprep.subr.mxu0 0.0
  %461 = vmatpush2.msra.mxu0 0.0
  %462 = vmatprep.subr.mxu0 0.0
  %463 = vmatpush2.msra.mxu0 0.0
  %464 = vmatprep.subr.mxu0 0.0
  %465 = vmatpush2.msra.mxu0 0.0
  %466 = vmatprep.mubr.f32.mxu0 0.0
  %467 = vmatmul.mubr.f32.gmra.mxu0 %v391
  %v468 = vpop.f32.mrf.mxu0
  %v469 = vadd.f32 0.0, %v468
  %v470 = vpop.f32.mrf.mxu0
  %471 = vmatprep.mubr.f32.mxu0 0.0
  %472 = vmatmul.mubr.f32.gmra.mxu0 %v394
  %v473 = vpop.f32.mrf.mxu0
  %v474 = vadd.f32 0.0, %v473
  %v475 = vpop.f32.mrf.mxu0
  %476 = vmatprep.mubr.f32.mxu0 0.0
  %477 = vmatmul.mubr.f32.gmra.mxu0 %v397
  %v478 = vpop.f32.mrf.mxu0
  %v479 = vadd.f32 0.0, %v478
  %v480 = vpop.f32.mrf.mxu0
  %481 = vmatprep.mubr.f32.mxu0 0.0
  %482 = vmatmul.mubr.f32.gmra.mxu0 %v400
  %v483 = vpop.f32.mrf.mxu0
  %v484 = vadd.f32 0.0, %v483
  %v485 = vpop.f32.mrf.mxu0
  %486 = vdwg.mxu0
  %v487 = vmax.f32 %v469, %v474
  %v488 = vmax.f32 %v479, %v484
  %v489 = vmax.f32 %v487, %v488
  %v490 = vmul.f32 %v489, 0.2
  %v491 = vmax.f32 %v489, %v490
  %493 = vrot.lane.b32.xlu0 %v385, 1
  %v494 = vpop.permute.xlu0 %493
  %v496 = vsel %vm43, 0.0, %v494
  %v497 = vmul.f32 %v496, %v49
  %499 = vrot.lane.b32.xlu0 %v491, 1
  %v500 = vpop.permute.xlu0 %499
  %v502 = vsel %vm43, 0.0, %v500
  %v503 = vmul.f32 %v502, %v49
  %505 = vrot.lane.b32.xlu0 %v173, 127
  %v506 = vpop.permute.xlu0 %505
  %v508 = vsel %vm58, %v506, 0.0
  %v509 = vmul.f32 %v508, %v64
  %511 = vrot.lane.b32.xlu0 %v279, 127
  %v512 = vpop.permute.xlu0 %511
  %v514 = vsel %vm58, %v512, 0.0
  %v515 = vmul.f32 %v514, %v64
  %v516 = vld [vmem:[%s2] sm:$0xff]
  %v517 = vld [vmem:[%s2 + $0x8] sm:$0xff]
  %v518 = vld [vmem:[%s2 + $0x10] sm:$0xff]
  %v519 = vld [vmem:[%s2 + $0x18] sm:$0xff]
  %vm520 = vcmask 523264
  %v522 = vsel %vm520, %v516, 0
  %v525 = vsel %vm520, %v517, 0
  %v528 = vsel %vm520, %v518, 0
  %v531 = vsel %vm520, %v519, 0
  %533 = vmatprep.subr.mxu0 0.0
  %534 = vmatpush1.msra.mxu0 0.0
  %535 = vmatprep.subr.mxu0 0.0
  %536 = vmatpush1.msra.mxu0 0.0
  %537 = vmatprep.subr.mxu0 0.0
  %538 = vmatpush1.msra.mxu0 0.0
  %539 = vmatprep.subr.mxu0 0.0
  %540 = vmatpush1.msra.mxu0 0.0
  %541 = vmatprep.subr.mxu0 0.0
  %542 = vmatpush1.msra.mxu0 0.0
  %543 = vmatprep.subr.mxu0 0.0
  %544 = vmatpush1.msra.mxu0 0.0
  %545 = vmatprep.subr.mxu0 0.0
  %546 = vmatpush1.msra.mxu0 0.0
  %547 = vmatprep.subr.mxu0 0.0
  %548 = vmatpush1.msra.mxu0 0.0
  %549 = vmatprep.subr.mxu0 0.0
  %550 = vmatpush1.msra.mxu0 %v515
  %551 = vmatprep.subr.mxu0 0.0
  %552 = vmatpush1.msra.mxu0 %v509
  %553 = vmatprep.subr.mxu0 0.0
  %554 = vmatpush1.msra.mxu0 %v491
  %555 = vmatprep.subr.mxu0 0.0
  %556 = vmatpush1.msra.mxu0 %v385
  %557 = vmatprep.subr.mxu0 0.0
  %558 = vmatpush1.msra.mxu0 %v279
  %559 = vmatprep.subr.mxu0 0.0
  %560 = vmatpush1.msra.mxu0 %v173
  %561 = vmatprep.subr.mxu0 0.0
  %562 = vmatpush1.msra.mxu0 %v503
  %563 = vmatprep.subr.mxu0 0.0
  %564 = vmatpush1.msra.mxu0 %v497
  %565 = vmatprep.subr.mxu0 0.0
  %566 = vmatpush2.msra.mxu0 0.0
  %567 = vmatprep.subr.mxu0 0.0
  %568 = vmatpush2.msra.mxu0 0.0
  %569 = vmatprep.subr.mxu0 0.0
  %570 = vmatpush2.msra.mxu0 0.0
  %571 = vmatprep.subr.mxu0 0.0
  %572 = vmatpush2.msra.mxu0 0.0
  %573 = vmatprep.subr.mxu0 0.0
  %574 = vmatpush2.msra.mxu0 0.0
  %575 = vmatprep.subr.mxu0 0.0
  %576 = vmatpush2.msra.mxu0 0.0
  %577 = vmatprep.subr.mxu0 0.0
  %578 = vmatpush2.msra.mxu0 0.0
  %579 = vmatprep.subr.mxu0 0.0
  %580 = vmatpush2.msra.mxu0 0.0
  %581 = vmatprep.subr.mxu0 0.0
  %582 = vmatpush2.msra.mxu0 0.0
  %583 = vmatprep.subr.mxu0 0.0
  %584 = vmatpush2.msra.mxu0 0.0
  %585 = vmatprep.subr.mxu0 0.0
  %586 = vmatpush2.msra.mxu0 0.0
  %587 = vmatprep.subr.mxu0 0.0
  %588 = vmatpush2.msra.mxu0 0.0
  %589 = vmatprep.subr.mxu0 0.0
  %590 = vmatpush2.msra.mxu0 0.0
  %591 = vmatprep.subr.mxu0 0.0
  %592 = vmatpush2.msra.mxu0 0.0
  %593 = vmatprep.subr.mxu0 0.0
  %594 = vmatpush2.msra.mxu0 0.0
  %595 = vmatprep.subr.mxu0 0.0
  %596 = vmatpush2.msra.mxu0 0.0
  %597 = vmatprep.mubr.f32.mxu0 0.0
  %598 = vmatmul.mubr.f32.gmra.mxu0 %v522
  %v599 = vpop.f32.mrf.mxu0
  %v600 = vadd.f32 0.0, %v599
  %v601 = vpop.f32.mrf.mxu0
  %602 = vmatprep.mubr.f32.mxu0 0.0
  %603 = vmatmul.mubr.f32.gmra.mxu0 %v525
  %v604 = vpop.f32.mrf.mxu0
  %v605 = vadd.f32 0.0, %v604
  %v606 = vpop.f32.mrf.mxu0
  %607 = vmatprep.mubr.f32.mxu0 0.0
  %608 = vmatmul.mubr.f32.gmra.mxu0 %v528
  %v609 = vpop.f32.mrf.mxu0
  %v610 = vadd.f32 0.0, %v609
  %v611 = vpop.f32.mrf.mxu0
  %612 = vmatprep.mubr.f32.mxu0 0.0
  %613 = vmatmul.mubr.f32.gmra.mxu0 %v531
  %v614 = vpop.f32.mrf.mxu0
  %v615 = vadd.f32 0.0, %v614
  %v616 = vpop.f32.mrf.mxu0
  %617 = vdwg.mxu0
  %v618 = vmax.f32 %v600, %v605
  %v619 = vmax.f32 %v610, %v615
  %v620 = vmax.f32 %v618, %v619
  %v621 = vmul.f32 %v620, 0.2
  %v622 = vmax.f32 %v620, %v621
  %v623 = vld [vmem:[%s3] sm:$0xff]
  %v624 = vld [vmem:[%s3 + $0x8] sm:$0xff]
  %v625 = vlaneseq
  %v626 = vshrl.u32 %v625, 7
  %v627 = vsub.s32 0, %v626
  %v628 = vrot.slane %v622, %v627
  %v629 = vmul.f32 %v623, %v628
  %v630 = vmul.f32 %v624, %v628
  %v631 = vld [vmem:[%s3 + $0x10] sm:$0xff]
  %v632 = vld [vmem:[%s3 + $0x18] sm:$0xff]
  %v633 = vlaneseq
  %v634 = vshrl.u32 %v633, 7
  %v635 = vsub.s32 1, %v634
  %v636 = vrot.slane %v622, %v635
  %v637 = vmul.f32 %v631, %v636
  %v638 = vmul.f32 %v632, %v636
  %v639 = vadd.f32 %v629, %v637
  %v640 = vadd.f32 %v630, %v638
  %v641 = vld [vmem:[%s3 + $0x20] sm:$0xff]
  %v642 = vld [vmem:[%s3 + $0x28] sm:$0xff]
  %v643 = vlaneseq
  %v644 = vshrl.u32 %v643, 7
  %v645 = vsub.s32 2, %v644
  %v646 = vrot.slane %v622, %v645
  %v647 = vmul.f32 %v641, %v646
  %v648 = vmul.f32 %v642, %v646
  %v649 = vadd.f32 %v639, %v647
  %v650 = vadd.f32 %v640, %v648
  %v651 = vld [vmem:[%s3 + $0x30] sm:$0xff]
  %v652 = vld [vmem:[%s3 + $0x38] sm:$0xff]
  %v653 = vlaneseq
  %v654 = vshrl.u32 %v653, 7
  %v655 = vsub.s32 3, %v654
  %v656 = vrot.slane %v622, %v655
  %v657 = vmul.f32 %v651, %v656
  %v658 = vmul.f32 %v652, %v656
  %v659 = vadd.f32 %v649, %v657
  %v660 = vadd.f32 %v650, %v658
  %v661 = vlaneseq
  %v662 = vshrl.u32 %v661, 7
  %v663 = vsub.s32 4, %v662
  %v664 = vrot.slane %v32, %v663
  %v665 = vmul.f32 %v659, %v664
  %v666 = vmul.f32 %v660, %v664
  %667 = vadd.xlane.f32.xlu0 %v665
  %v668 = vpop.xlane.xlu0 %667
  %669 = vadd.xlane.f32.xlu0 %v666
  %v670 = vpop.xlane.xlu0 %669
  %v671 = vlaneseq
  %v672 = vshrl.u32 %v671, 7
  %v673 = vsub.s32 5, %v672
  %v674 = vrot.slane %v32, %v673
  %v675 = vmul.f32 %v659, %v674
  %v676 = vmul.f32 %v660, %v674
  %677 = vadd.xlane.f32.xlu0 %v675
  %v678 = vpop.xlane.xlu0 %677
  %679 = vadd.xlane.f32.xlu0 %v676
  %v680 = vpop.xlane.xlu0 %679
  %v681 = vmul.f32 %v668, 0.2
  %v682 = vmul.f32 %v670, 0.2
  %v683 = vmax.f32 %v668, %v681
  %v684 = vmax.f32 %v670, %v682
  %v685 = vmul.f32 %v683, %v664
  %v686 = vmul.f32 %v684, %v664
  %v687 = vmul.f32 %v678, 0.2
  %v688 = vmul.f32 %v680, 0.2
  %v689 = vmax.f32 %v678, %v687
  %v690 = vmax.f32 %v680, %v688
  %v691 = vmul.f32 %v689, %v674
  %v692 = vmul.f32 %v690, %v674
  %v693 = vadd.f32 %v685, %v691
  %v694 = vadd.f32 %v686, %v692
  %v695 = vld [vmem:[%s7] sm:$0xff]
  %v696 = vld [vmem:[%s7 + $0x8] sm:$0xff]
  %v697 = vmul.f32 %v693, %v695
  %v698 = vmul.f32 %v694, %v696
  %v699 = vrot.slane %v697, 4
  %v700 = vadd.f32 %v697, %v699
  %v701 = vrot.slane %v700, 2
  %v702 = vadd.f32 %v700, %v701
  %v703 = vrot.slane %v702, 1
  %v704 = vadd.f32 %v702, %v703
  %v705 = vrot.slane %v698, 4
  %v706 = vadd.f32 %v698, %v705
  %v707 = vrot.slane %v706, 2
  %v708 = vadd.f32 %v706, %v707
  %v709 = vrot.slane %v708, 1
  %v710 = vadd.f32 %v708, %v709
  %vm711 = vcmask 1040384
  %v712 = vsel %vm711, %v704, %v710
  %714 = vrot.lane.b32.xlu0 %v712, 2
  %v715 = vpop.permute.xlu0 %714
  %vm717 = vcmask 15360
  %v718 = vsel %vm717, 0.0, %v715
  %v719 = vlaneseq
  %v720 = vshrl.u32 %v719, 7
  %v721 = vsub.s32 0, %v720
  %v722 = vrot.slane %v32, %v721
  %v723 = vmul.f32 %v718, %v722
  %724 = vrot.lane.b32.xlu0 %v712, 1
  %v725 = vpop.permute.xlu0 %724
  %v727 = vsel %vm43, 0.0, %v725
  %v728 = vmul.f32 %v727, %v49
  %729 = vrot.lane.b32.xlu0 %v712, 127
  %v730 = vpop.permute.xlu0 %729
  %v732 = vsel %vm58, %v730, 0.0
  %v733 = vmul.f32 %v732, %v64
  %734 = vrot.lane.b32.xlu0 %v712, 126
  %v735 = vpop.permute.xlu0 %734
  %vm737 = vcmask 1031168
  %v738 = vsel %vm737, %v735, 0.0
  %v739 = vlaneseq
  %v740 = vshrl.u32 %v739, 7
  %v741 = vsub.s32 3, %v740
  %v742 = vrot.slane %v32, %v741
  %v743 = vmul.f32 %v738, %v742
  %v745 = vrot.slane %v728, 6
  %v747 = vrot.slane %v712, 4
  %v750 = vrot.slane %v733, 2
  %vm752 = vcmask 1041408
  %v753 = vsel %vm752, %v723, %v745
  %vm754 = vcmask 1043456
  %v755 = vsel %vm754, %v753, %v747
  %vm756 = vcmask 1045504
  %v757 = vsel %vm756, %v755, %v750
  %v758 = vld [vmem:[%s4] sm:$0xf]
  %vm759 = vcmask 80896
  %v761 = vsel %vm759, %v758, 0
  %v764 = vsel %vm752, %v743, 0
  %766 = vmatprep.subr.mxu0 0.0
  %767 = vmatpush1.msra.mxu0 0.0
  %768 = vmatprep.subr.mxu0 0.0
  %769 = vmatpush1.msra.mxu0 0.0
  %770 = vmatprep.subr.mxu0 0.0
  %771 = vmatpush1.msra.mxu0 0.0
  %772 = vmatprep.subr.mxu0 0.0
  %773 = vmatpush1.msra.mxu0 0.0
  %774 = vmatprep.subr.mxu0 0.0
  %775 = vmatpush1.msra.mxu0 0.0
  %776 = vmatprep.subr.mxu0 0.0
  %777 = vmatpush1.msra.mxu0 0.0
  %778 = vmatprep.subr.mxu0 0.0
  %779 = vmatpush1.msra.mxu0 0.0
  %780 = vmatprep.subr.mxu0 0.0
  %781 = vmatpush1.msra.mxu0 0.0
  %782 = vmatprep.subr.mxu0 0.0
  %783 = vmatpush1.msra.mxu0 0.0
  %784 = vmatprep.subr.mxu0 0.0
  %785 = vmatpush1.msra.mxu0 0.0
  %786 = vmatprep.subr.mxu0 0.0
  %787 = vmatpush1.msra.mxu0 0.0
  %788 = vmatprep.subr.mxu0 0.0
  %789 = vmatpush1.msra.mxu0 0.0
  %790 = vmatprep.subr.mxu0 0.0
  %791 = vmatpush1.msra.mxu0 0.0
  %792 = vmatprep.subr.mxu0 0.0
  %793 = vmatpush1.msra.mxu0 0.0
  %794 = vmatprep.subr.mxu0 0.0
  %795 = vmatpush1.msra.mxu0 %v764
  %796 = vmatprep.subr.mxu0 0.0
  %797 = vmatpush1.msra.mxu0 %v757
  %798 = vmatprep.subr.mxu0 0.0
  %799 = vmatpush2.msra.mxu0 0.0
  %800 = vmatprep.subr.mxu0 0.0
  %801 = vmatpush2.msra.mxu0 0.0
  %802 = vmatprep.subr.mxu0 0.0
  %803 = vmatpush2.msra.mxu0 0.0
  %804 = vmatprep.subr.mxu0 0.0
  %805 = vmatpush2.msra.mxu0 0.0
  %806 = vmatprep.subr.mxu0 0.0
  %807 = vmatpush2.msra.mxu0 0.0
  %808 = vmatprep.subr.mxu0 0.0
  %809 = vmatpush2.msra.mxu0 0.0
  %810 = vmatprep.subr.mxu0 0.0
  %811 = vmatpush2.msra.mxu0 0.0
  %812 = vmatprep.subr.mxu0 0.0
  %813 = vmatpush2.msra.mxu0 0.0
  %814 = vmatprep.subr.mxu0 0.0
  %815 = vmatpush2.msra.mxu0 0.0
  %816 = vmatprep.subr.mxu0 0.0
  %817 = vmatpush2.msra.mxu0 0.0
  %818 = vmatprep.subr.mxu0 0.0
  %819 = vmatpush2.msra.mxu0 0.0
  %820 = vmatprep.subr.mxu0 0.0
  %821 = vmatpush2.msra.mxu0 0.0
  %822 = vmatprep.subr.mxu0 0.0
  %823 = vmatpush2.msra.mxu0 0.0
  %824 = vmatprep.subr.mxu0 0.0
  %825 = vmatpush2.msra.mxu0 0.0
  %826 = vmatprep.subr.mxu0 0.0
  %827 = vmatpush2.msra.mxu0 0.0
  %828 = vmatprep.subr.mxu0 0.0
  %829 = vmatpush2.msra.mxu0 0.0
  %830 = vmatprep.mubr.f32.mxu0 0.0
  %831 = vmatmul.mubr.f32.gmra.mxu0 %v761
  %v832 = vpop.f32.mrf.mxu0
  %v833 = vadd.f32 0.0, %v832
  %v834 = vpop.f32.mrf.mxu0
  %835 = vdwg.mxu0
  %v836 = vmul.f32 %v833, 0.2
  %v837 = vmax.f32 %v833, %v836
  %839 = vrot.lane.b32.xlu0 %v837, 1
  %v840 = vpop.permute.xlu0 %839
  %v842 = vsel %vm43, 0.0, %v840
  %v843 = vmul.f32 %v842, %v49
  %844 = vrot.lane.b32.xlu0 %v837, 127
  %v845 = vpop.permute.xlu0 %844
  %v847 = vsel %vm58, %v845, 0.0
  %v848 = vmul.f32 %v847, %v64
  %v849 = vrot.slane %v837, 4
  %v851 = vsel %vm754, %v843, %v849
  %v852 = vld [vmem:[%s5] sm:$0xff]
  %v853 = vld [vmem:[%s5 + $0x8] sm:$0xff]
  %v854 = vld [vmem:[%s5 + $0x10] sm:$0xff]
  %v855 = vld [vmem:[%s5 + $0x18] sm:$0xff]
  %vm856 = vcmask 97280
  %v858 = vsel %vm856, %v852, 0
  %v861 = vsel %vm856, %v853, 0
  %v864 = vsel %vm856, %v854, 0
  %v867 = vsel %vm856, %v855, 0
  %v870 = vsel %vm754, %v848, 0
  %872 = vmatprep.subr.mxu0 0.0
  %873 = vmatpush1.msra.mxu0 0.0
  %874 = vmatprep.subr.mxu0 0.0
  %875 = vmatpush1.msra.mxu0 0.0
  %876 = vmatprep.subr.mxu0 0.0
  %877 = vmatpush1.msra.mxu0 0.0
  %878 = vmatprep.subr.mxu0 0.0
  %879 = vmatpush1.msra.mxu0 0.0
  %880 = vmatprep.subr.mxu0 0.0
  %881 = vmatpush1.msra.mxu0 0.0
  %882 = vmatprep.subr.mxu0 0.0
  %883 = vmatpush1.msra.mxu0 0.0
  %884 = vmatprep.subr.mxu0 0.0
  %885 = vmatpush1.msra.mxu0 0.0
  %886 = vmatprep.subr.mxu0 0.0
  %887 = vmatpush1.msra.mxu0 0.0
  %888 = vmatprep.subr.mxu0 0.0
  %889 = vmatpush1.msra.mxu0 0.0
  %890 = vmatprep.subr.mxu0 0.0
  %891 = vmatpush1.msra.mxu0 0.0
  %892 = vmatprep.subr.mxu0 0.0
  %893 = vmatpush1.msra.mxu0 0.0
  %894 = vmatprep.subr.mxu0 0.0
  %895 = vmatpush1.msra.mxu0 0.0
  %896 = vmatprep.subr.mxu0 0.0
  %897 = vmatpush1.msra.mxu0 0.0
  %898 = vmatprep.subr.mxu0 0.0
  %899 = vmatpush1.msra.mxu0 0.0
  %900 = vmatprep.subr.mxu0 0.0
  %901 = vmatpush1.msra.mxu0 %v870
  %902 = vmatprep.subr.mxu0 0.0
  %903 = vmatpush1.msra.mxu0 %v851
  %904 = vmatprep.subr.mxu0 0.0
  %905 = vmatpush2.msra.mxu0 0.0
  %906 = vmatprep.subr.mxu0 0.0
  %907 = vmatpush2.msra.mxu0 0.0
  %908 = vmatprep.subr.mxu0 0.0
  %909 = vmatpush2.msra.mxu0 0.0
  %910 = vmatprep.subr.mxu0 0.0
  %911 = vmatpush2.msra.mxu0 0.0
  %912 = vmatprep.subr.mxu0 0.0
  %913 = vmatpush2.msra.mxu0 0.0
  %914 = vmatprep.subr.mxu0 0.0
  %915 = vmatpush2.msra.mxu0 0.0
  %916 = vmatprep.subr.mxu0 0.0
  %917 = vmatpush2.msra.mxu0 0.0
  %918 = vmatprep.subr.mxu0 0.0
  %919 = vmatpush2.msra.mxu0 0.0
  %920 = vmatprep.subr.mxu0 0.0
  %921 = vmatpush2.msra.mxu0 0.0
  %922 = vmatprep.subr.mxu0 0.0
  %923 = vmatpush2.msra.mxu0 0.0
  %924 = vmatprep.subr.mxu0 0.0
  %925 = vmatpush2.msra.mxu0 0.0
  %926 = vmatprep.subr.mxu0 0.0
  %927 = vmatpush2.msra.mxu0 0.0
  %928 = vmatprep.subr.mxu0 0.0
  %929 = vmatpush2.msra.mxu0 0.0
  %930 = vmatprep.subr.mxu0 0.0
  %931 = vmatpush2.msra.mxu0 0.0
  %932 = vmatprep.subr.mxu0 0.0
  %933 = vmatpush2.msra.mxu0 0.0
  %934 = vmatprep.subr.mxu0 0.0
  %935 = vmatpush2.msra.mxu0 0.0
  %936 = vmatprep.mubr.f32.mxu0 0.0
  %937 = vmatmul.mubr.f32.gmra.mxu0 %v858
  %v938 = vpop.f32.mrf.mxu0
  %v939 = vadd.f32 0.0, %v938
  %v940 = vpop.f32.mrf.mxu0
  %941 = vmatprep.mubr.f32.mxu0 0.0
  %942 = vmatmul.mubr.f32.gmra.mxu0 %v861
  %v943 = vpop.f32.mrf.mxu0
  %v944 = vadd.f32 0.0, %v943
  %v945 = vpop.f32.mrf.mxu0
  %946 = vmatprep.mubr.f32.mxu0 0.0
  %947 = vmatmul.mubr.f32.gmra.mxu0 %v864
  %v948 = vpop.f32.mrf.mxu0
  %v949 = vadd.f32 0.0, %v948
  %v950 = vpop.f32.mrf.mxu0
  %951 = vmatprep.mubr.f32.mxu0 0.0
  %952 = vmatmul.mubr.f32.gmra.mxu0 %v867
  %v953 = vpop.f32.mrf.mxu0
  %v954 = vadd.f32 0.0, %v953
  %v955 = vpop.f32.mrf.mxu0
  %956 = vdwg.mxu0
  %v957 = vmul.f32 %v939, 0.2
  %v958 = vmax.f32 %v939, %v957
  %v959 = vmul.f32 %v944, 0.2
  %v960 = vmax.f32 %v944, %v959
  %v961 = vmul.f32 %v949, 0.2
  %v962 = vmax.f32 %v949, %v961
  %v963 = vmul.f32 %v954, 0.2
  %v964 = vmax.f32 %v954, %v963
  %966 = vrot.lane.b32.xlu0 %v964, 1
  %v967 = vpop.permute.xlu0 %966
  %v969 = vsel %vm43, 0.0, %v967
  %v970 = vmul.f32 %v969, %v49
  %972 = vrot.lane.b32.xlu0 %v958, 127
  %v973 = vpop.permute.xlu0 %972
  %v975 = vsel %vm58, %v973, 0.0
  %v976 = vmul.f32 %v975, %v64
  %v977 = vld [vmem:[%s6] sm:$0xff]
  %v978 = vld [vmem:[%s6 + $0x8] sm:$0xff]
  %v980 = vsel %vm71, %v977, 0
  %v983 = vsel %vm71, %v978, 0
  %985 = vmatprep.subr.mxu0 0.0
  %986 = vmatpush1.msra.mxu0 0.0
  %987 = vmatprep.subr.mxu0 0.0
  %988 = vmatpush1.msra.mxu0 0.0
  %989 = vmatprep.subr.mxu0 0.0
  %990 = vmatpush1.msra.mxu0 0.0
  %991 = vmatprep.subr.mxu0 0.0
  %992 = vmatpush1.msra.mxu0 0.0
  %993 = vmatprep.subr.mxu0 0.0
  %994 = vmatpush1.msra.mxu0 0.0
  %995 = vmatprep.subr.mxu0 0.0
  %996 = vmatpush1.msra.mxu0 0.0
  %997 = vmatprep.subr.mxu0 0.0
  %998 = vmatpush1.msra.mxu0 0.0
  %999 = vmatprep.subr.mxu0 0.0
  %1000 = vmatpush1.msra.mxu0 0.0
  %1001 = vmatprep.subr.mxu0 0.0
  %1002 = vmatpush1.msra.mxu0 0.0
  %1003 = vmatprep.subr.mxu0 0.0
  %1004 = vmatpush1.msra.mxu0 0.0
  %1005 = vmatprep.subr.mxu0 0.0
  %1006 = vmatpush1.msra.mxu0 %v976
  %1007 = vmatprep.subr.mxu0 0.0
  %1008 = vmatpush1.msra.mxu0 %v964
  %1009 = vmatprep.subr.mxu0 0.0
  %1010 = vmatpush1.msra.mxu0 %v962
  %1011 = vmatprep.subr.mxu0 0.0
  %1012 = vmatpush1.msra.mxu0 %v960
  %1013 = vmatprep.subr.mxu0 0.0
  %1014 = vmatpush1.msra.mxu0 %v958
  %1015 = vmatprep.subr.mxu0 0.0
  %1016 = vmatpush1.msra.mxu0 %v970
  %1017 = vmatprep.subr.mxu0 0.0
  %1018 = vmatpush2.msra.mxu0 0.0
  %1019 = vmatprep.subr.mxu0 0.0
  %1020 = vmatpush2.msra.mxu0 0.0
  %1021 = vmatprep.subr.mxu0 0.0
  %1022 = vmatpush2.msra.mxu0 0.0
  %1023 = vmatprep.subr.mxu0 0.0
  %1024 = vmatpush2.msra.mxu0 0.0
  %1025 = vmatprep.subr.mxu0 0.0
  %1026 = vmatpush2.msra.mxu0 0.0
  %1027 = vmatprep.subr.mxu0 0.0
  %1028 = vmatpush2.msra.mxu0 0.0
  %1029 = vmatprep.subr.mxu0 0.0
  %1030 = vmatpush2.msra.mxu0 0.0
  %1031 = vmatprep.subr.mxu0 0.0
  %1032 = vmatpush2.msra.mxu0 0.0
  %1033 = vmatprep.subr.mxu0 0.0
  %1034 = vmatpush2.msra.mxu0 0.0
  %1035 = vmatprep.subr.mxu0 0.0
  %1036 = vmatpush2.msra.mxu0 0.0
  %1037 = vmatprep.subr.mxu0 0.0
  %1038 = vmatpush2.msra.mxu0 0.0
  %1039 = vmatprep.subr.mxu0 0.0
  %1040 = vmatpush2.msra.mxu0 0.0
  %1041 = vmatprep.subr.mxu0 0.0
  %1042 = vmatpush2.msra.mxu0 0.0
  %1043 = vmatprep.subr.mxu0 0.0
  %1044 = vmatpush2.msra.mxu0 0.0
  %1045 = vmatprep.subr.mxu0 0.0
  %1046 = vmatpush2.msra.mxu0 0.0
  %1047 = vmatprep.subr.mxu0 0.0
  %1048 = vmatpush2.msra.mxu0 0.0
  %1049 = vmatprep.mubr.f32.mxu0 0.0
  %1050 = vmatmul.mubr.f32.gmra.mxu0 %v980
  %v1051 = vpop.f32.mrf.mxu0
  %v1052 = vadd.f32 0.0, %v1051
  %v1053 = vpop.f32.mrf.mxu0
  %1054 = vmatprep.mubr.f32.mxu0 0.0
  %1055 = vmatmul.mubr.f32.gmra.mxu0 %v983
  %v1056 = vpop.f32.mrf.mxu0
  %v1057 = vadd.f32 0.0, %v1056
  %v1058 = vpop.f32.mrf.mxu0
  %1059 = vdwg.mxu0
  %v1060 = vxor.u32 %v1052, 2147483648
  %v1061 = vxor.u32 %v1057, 2147483648
  %v1062 = vmul.f32 %v1060, 1.442695
  %v1063 = vpow.pop %v1062
  %v1064 = vmul.f32 %v1061, 1.442695
  %v1065 = vpow.pop %v1064
  %v1066 = vadd.f32 %v1063, 1.0
  %v1067 = vadd.f32 %v1065, 1.0
  %v1068 = vrcp.pop %v1066
  %v1069 = vmul.f32 1.0, %v1068
  %v1070 = vrcp.pop %v1067
  %v1071 = vmul.f32 1.0, %v1070
  %1072 = vst [vmem:[%s9] sm:$0xff] %v1069
  %1073 = vst [vmem:[%s9 + $0x8] sm:$0xff] %v1071
  // Predicated region
  $region38: #{autoencoder_forward.1} parent=0 // pred_check
    _
  $region39: #{autoencoder_forward.1} parent=0 // pred_check_branch
    %1075 = sbr.rel (0) target = $region41
  $region40: #{autoencoder_forward.1} parent=0 // pred_region
    _
  $region41: #{autoencoder_forward.1} parent=0 // pred_fallthru
    _
  // Predicated region
  $region42: #{autoencoder_forward.1} parent=0 // pred_check
    _
  $region43: #{autoencoder_forward.1} parent=0 // pred_check_branch
    %1077 = sbr.rel (0) target = $region45
  $region44: #{autoencoder_forward.1} parent=0 // pred_region
    _
  $region45: #{autoencoder_forward.1} parent=0 // pred_fallthru
    _

</llo_original>
